<compile_context>
chip_gen: v7x
topology: tpu7x:2x2x1
jax: 0.10.0
libtpu: 0.0.40
codegen_flags: <defaults>
</compile_context>

<pallas_src>
import jax
import jax.numpy as jnp
from jax import lax
from jax.experimental import pallas as pl
from jax.experimental.pallas import tpu as pltpu
from functools import partial


def mha_kernel(x_ref, wq_ref, wk_ref, wv_ref, wp_ref, b_ref, o_ref, *, num_heads):
    x = x_ref[0]                                  # (N, C), bf16
    N, C = x.shape

    # Hoisted bias read (single broadcast, f32).
    bias = b_ref[0].astype(jnp.float32)           # (C,)

    acc = jnp.zeros((N, C), dtype=jnp.float32)

    # num_heads is a small static constant -> unrolled Python loop; each head's
    # weights are a static slice along the *leading* axis (no lane slicing).
    for h in range(num_heads):
        # Per-head projections on the MXU: (N, C) @ (C, hd) -> (N, hd).
        # Softmax scale is already folded into wq host-side.
        q = jnp.dot(x, wq_ref[h], preferred_element_type=jnp.float32).astype(jnp.bfloat16)
        k = jnp.dot(x, wk_ref[h], preferred_element_type=jnp.float32).astype(jnp.bfloat16)
        v = jnp.dot(x, wv_ref[h], preferred_element_type=jnp.float32).astype(jnp.bfloat16)

        # Scores: contract last axes of q and k directly (no explicit k.T).
        s = lax.dot_general(q, k, (((1,), (1,)), ((), ())),
                            preferred_element_type=jnp.float32)        # (N, N) f32

        # Softmax in f32; EUP approx reciprocal for the denominator.
        s = s - jnp.max(s, axis=-1, keepdims=True)
        p = jnp.exp(s)
        p = p * pl.reciprocal(jnp.sum(p, axis=-1, keepdims=True), approx=True)

        head_out = jnp.dot(p.astype(jnp.bfloat16), v,
                           preferred_element_type=jnp.float32)          # (N, hd) f32

        # concat(heads) @ W_proj == sum_h head_out_h @ W_proj[h*hd:(h+1)*hd, :]
        acc = acc + jnp.dot(head_out.astype(jnp.bfloat16), wp_ref[h],
                            preferred_element_type=jnp.float32)         # (N, C)

    o_ref[0] = (acc + bias).astype(o_ref.dtype)


def multi_head_attention(x, w_qkv, w_proj, b_proj, *, num_heads=4):
    """x: (B, N, C) f32.  w_qkv: (C, 3C) and w_proj: (C, C) stored as
    (in_features, out_features) (i.e. nn.Linear weight pre-transposed).
    b_proj: (C,).  Returns (B, N, C) f32."""
    B, N, C = x.shape
    assert C % num_heads == 0, "dim must be divisible by num_heads"
    hd = C // num_heads
    scale = hd ** (-0.5)

    # Host-side weight prep: split per head along a leading axis and fold the
    # softmax scale into the q slab (free at trace/compile time).
    wq = w_qkv[:, 0 * C:1 * C].reshape(C, num_heads, hd).transpose(1, 0, 2) * scale
    wk = w_qkv[:, 1 * C:2 * C].reshape(C, num_heads, hd).transpose(1, 0, 2)
    wv = w_qkv[:, 2 * C:3 * C].reshape(C, num_heads, hd).transpose(1, 0, 2)
    # Proj weight in (in, out) layout: rows h*hd:(h+1)*hd consume head h.
    wp = w_proj.reshape(num_heads, hd, C)
    bp = b_proj.reshape(1, C).astype(jnp.float32)

    # bf16 matmul operands; accumulation stays f32 inside the kernel.
    x_bf = x.astype(jnp.bfloat16)
    wq = wq.astype(jnp.bfloat16)
    wk = wk.astype(jnp.bfloat16)
    wv = wv.astype(jnp.bfloat16)
    wp = wp.astype(jnp.bfloat16)

    kernel = partial(mha_kernel, num_heads=num_heads)
    return pl.pallas_call(
        kernel,
        out_shape=jax.ShapeDtypeStruct((B, N, C), jnp.float32),
        grid_spec=pltpu.PrefetchScalarGridSpec(
            num_scalar_prefetch=0,
            grid=(B,),
            in_specs=[
                pl.BlockSpec((1, N, C), lambda b: (b, 0, 0)),           # x (one batch)
                pl.BlockSpec((num_heads, C, hd), lambda b: (0, 0, 0)),  # wq (scale folded)
                pl.BlockSpec((num_heads, C, hd), lambda b: (0, 0, 0)),  # wk
                pl.BlockSpec((num_heads, C, hd), lambda b: (0, 0, 0)),  # wv
                pl.BlockSpec((num_heads, hd, C), lambda b: (0, 0, 0)),  # w_proj per head
                pl.BlockSpec((1, C), lambda b: (0, 0)),                 # proj bias
            ],
            out_specs=pl.BlockSpec((1, N, C), lambda b: (b, 0, 0)),
        ),
        compiler_params=pltpu.CompilerParams(
            dimension_semantics=("parallel",),
            vmem_limit_bytes=32 * 1024 * 1024,
        ),
    )(x_bf, wq, wk, wv, wp, bp)


def reference_mha(x, w_qkv, w_proj, b_proj, num_heads=4):
    B, N, C = x.shape
    hd = C // num_heads
    scale = hd ** (-0.5)
    qkv = x @ w_qkv                                        # (B, N, 3C)
    qkv = qkv.reshape(B, N, 3, num_heads, hd).transpose(2, 0, 3, 1, 4)
    q, k, v = qkv[0], qkv[1], qkv[2]                       # (B, H, N, hd)
    attn = (q @ jnp.swapaxes(k, -2, -1)) * scale
    attn = jax.nn.softmax(attn, axis=-1)
    out = (attn @ v).transpose(0, 2, 1, 3).reshape(B, N, C)
    return out @ w_proj + b_proj


if __name__ == "__main__":
    B, N, C = 2, 8, 32
    num_heads = 4

    key = jax.random.PRNGKey(0)
    kx, kq, kp, kb = jax.random.split(key, 4)

    x = jax.random.normal(kx, (B, N, C), dtype=jnp.float32)
    # Deterministic synthetic parameters (nn.Linear shapes, stored pre-transposed):
    #   qkv:  Linear(C, 3C, bias=False)  -> w_qkv  (C, 3C)
    #   proj: Linear(C, C)               -> w_proj (C, C), b_proj (C,)
    w_qkv = jax.random.normal(kq, (C, 3 * C), dtype=jnp.float32) * (C ** -0.5)
    w_proj = jax.random.normal(kp, (C, C), dtype=jnp.float32) * (C ** -0.5)
    b_proj = jax.random.normal(kb, (C,), dtype=jnp.float32) * 0.1

    out = multi_head_attention(x, w_qkv, w_proj, b_proj, num_heads=num_heads)
    out = jax.block_until_ready(out)

    ref = reference_mha(x, w_qkv, w_proj, b_proj, num_heads=num_heads)
    assert out.shape == (B, N, C)
    # bf16 matmul operands -> loose tolerance vs the pure-f32 reference.
    assert jnp.allclose(out, ref, atol=1e-1, rtol=1e-1), "mismatch vs reference"

    print("KERNEL_OK")
</pallas_src>

<mosaic_0001>
module attributes {stable_mosaic.version = 11 : i64} {
  func.func @mha_kernel(%arg0: i32, %arg1: memref<1x8x32xbf16, #tpu.memory_space<vmem>>, %arg2: memref<4x32x8xbf16, #tpu.memory_space<vmem>>, %arg3: memref<4x32x8xbf16, #tpu.memory_space<vmem>>, %arg4: memref<4x32x8xbf16, #tpu.memory_space<vmem>>, %arg5: memref<4x8x32xbf16, #tpu.memory_space<vmem>>, %arg6: memref<1x32xf32, #tpu.memory_space<vmem>>, %arg7: memref<1x8x32xf32, #tpu.memory_space<vmem>>) attributes {dimension_semantics = [#tpu.dimension_semantics<parallel>], iteration_bounds = array<i64: 2>, scalar_prefetch = 0 : i64, scratch_operands = 0 : i64, tpu.core_type = #tpu.core_type<tc>, window_params = [{transform_indices = @transform_0, window_bounds = array<i64: 1, 8, 32>}, {pipeline_mode = #tpu.pipeline_mode<synchronous>, transform_indices = @transform_1, window_bounds = array<i64: 4, 32, 8>}, {pipeline_mode = #tpu.pipeline_mode<synchronous>, transform_indices = @transform_2, window_bounds = array<i64: 4, 32, 8>}, {pipeline_mode = #tpu.pipeline_mode<synchronous>, transform_indices = @transform_3, window_bounds = array<i64: 4, 32, 8>}, {pipeline_mode = #tpu.pipeline_mode<synchronous>, transform_indices = @transform_4, window_bounds = array<i64: 4, 8, 32>}, {pipeline_mode = #tpu.pipeline_mode<synchronous>, transform_indices = @transform_5, window_bounds = array<i64: 1, 32>}, {transform_indices = @transform_6, window_bounds = array<i64: 1, 8, 32>}]} {
    %c0 = arith.constant 0 : index
    %c0_0 = arith.constant 0 : index
    %c0_1 = arith.constant 0 : index
    %0 = vector.load %arg1[%c0, %c0_0, %c0_1] : memref<1x8x32xbf16, #tpu.memory_space<vmem>>, vector<1x8x32xbf16>
    %1 = vector.shape_cast %0 : vector<1x8x32xbf16> to vector<8x32xbf16>
    %c0_2 = arith.constant 0 : index
    %c0_3 = arith.constant 0 : index
    %2 = vector.load %arg6[%c0_2, %c0_3] : memref<1x32xf32, #tpu.memory_space<vmem>>, vector<1x32xf32>
    %3 = vector.shape_cast %2 : vector<1x32xf32> to vector<32xf32>
    %cst = arith.constant 0.000000e+00 : f32
    %4 = vector.broadcast %cst : f32 to vector<8x32xf32>
    %c0_4 = arith.constant 0 : index
    %c0_5 = arith.constant 0 : index
    %c0_6 = arith.constant 0 : index
    %5 = vector.load %arg2[%c0_4, %c0_5, %c0_6] : memref<4x32x8xbf16, #tpu.memory_space<vmem>>, vector<1x32x8xbf16>
    %6 = vector.shape_cast %5 : vector<1x32x8xbf16> to vector<32x8xbf16>
    %cst_7 = arith.constant dense<0.000000e+00> : vector<8x8xf32>
    %7 = tpu.matmul %1, %6, %cst_7 {dimension_numbers = #tpu.dot_dimension_numbers<[1], [0], [0], [1], [0, 0, 1, 1], [], []>} : vector<8x32xbf16>, vector<32x8xbf16>, vector<8x8xf32> -> vector<8x8xf32>
    %8 = arith.truncf %7 : vector<8x8xf32> to vector<8x8xbf16>
    %c0_8 = arith.constant 0 : index
    %c0_9 = arith.constant 0 : index
    %c0_10 = arith.constant 0 : index
    %9 = vector.load %arg3[%c0_8, %c0_9, %c0_10] : memref<4x32x8xbf16, #tpu.memory_space<vmem>>, vector<1x32x8xbf16>
    %10 = vector.shape_cast %9 : vector<1x32x8xbf16> to vector<32x8xbf16>
    %cst_11 = arith.constant dense<0.000000e+00> : vector<8x8xf32>
    %11 = tpu.matmul %1, %10, %cst_11 {dimension_numbers = #tpu.dot_dimension_numbers<[1], [0], [0], [1], [0, 0, 1, 1], [], []>} : vector<8x32xbf16>, vector<32x8xbf16>, vector<8x8xf32> -> vector<8x8xf32>
    %12 = arith.truncf %11 : vector<8x8xf32> to vector<8x8xbf16>
    %c0_12 = arith.constant 0 : index
    %c0_13 = arith.constant 0 : index
    %c0_14 = arith.constant 0 : index
    %13 = vector.load %arg4[%c0_12, %c0_13, %c0_14] : memref<4x32x8xbf16, #tpu.memory_space<vmem>>, vector<1x32x8xbf16>
    %14 = vector.shape_cast %13 : vector<1x32x8xbf16> to vector<32x8xbf16>
    %cst_15 = arith.constant dense<0.000000e+00> : vector<8x8xf32>
    %15 = tpu.matmul %1, %14, %cst_15 {dimension_numbers = #tpu.dot_dimension_numbers<[1], [0], [0], [1], [0, 0, 1, 1], [], []>} : vector<8x32xbf16>, vector<32x8xbf16>, vector<8x8xf32> -> vector<8x8xf32>
    %16 = arith.truncf %15 : vector<8x8xf32> to vector<8x8xbf16>
    %cst_16 = arith.constant dense<0.000000e+00> : vector<8x8xf32>
    %17 = tpu.matmul %8, %12, %cst_16 {dimension_numbers = #tpu.dot_dimension_numbers<[1], [1], [0], [0], [0, 0, 1, 0], [], []>} : vector<8x8xbf16>, vector<8x8xbf16>, vector<8x8xf32> -> vector<8x8xf32>
    %cst_17 = arith.constant dense<0xFF800000> : vector<8xf32>
    %18 = vector.multi_reduction <maximumf>, %17, %cst_17 [1] : vector<8x8xf32> to vector<8xf32>
    %19 = vector.shape_cast %18 : vector<8xf32> to vector<8x1xf32>
    %20 = vector.broadcast %19 : vector<8x1xf32> to vector<8x8xf32>
    %21 = arith.subf %17, %20 : vector<8x8xf32>
    %22 = math.exp %21 : vector<8x8xf32>
    %cst_18 = arith.constant dense<0.000000e+00> : vector<8xf32>
    %23 = vector.multi_reduction <add>, %22, %cst_18 [1] : vector<8x8xf32> to vector<8xf32>
    %24 = vector.shape_cast %23 : vector<8xf32> to vector<8x1xf32>
    %25 = tpu.reciprocal %24 {approx = true} : vector<8x1xf32> -> vector<8x1xf32>
    %26 = vector.broadcast %25 : vector<8x1xf32> to vector<8x8xf32>
    %27 = arith.mulf %22, %26 : vector<8x8xf32>
    %28 = arith.truncf %27 : vector<8x8xf32> to vector<8x8xbf16>
    %cst_19 = arith.constant dense<0.000000e+00> : vector<8x8xf32>
    %29 = tpu.matmul %28, %16, %cst_19 {dimension_numbers = #tpu.dot_dimension_numbers<[1], [0], [0], [1], [0, 0, 1, 1], [], []>} : vector<8x8xbf16>, vector<8x8xbf16>, vector<8x8xf32> -> vector<8x8xf32>
    %30 = arith.truncf %29 : vector<8x8xf32> to vector<8x8xbf16>
    %c0_20 = arith.constant 0 : index
    %c0_21 = arith.constant 0 : index
    %c0_22 = arith.constant 0 : index
    %31 = vector.load %arg5[%c0_20, %c0_21, %c0_22] : memref<4x8x32xbf16, #tpu.memory_space<vmem>>, vector<1x8x32xbf16>
    %32 = vector.shape_cast %31 : vector<1x8x32xbf16> to vector<8x32xbf16>
    %cst_23 = arith.constant dense<0.000000e+00> : vector<8x32xf32>
    %33 = tpu.matmul %30, %32, %cst_23 {dimension_numbers = #tpu.dot_dimension_numbers<[1], [0], [0], [1], [0, 0, 1, 1], [], []>} : vector<8x8xbf16>, vector<8x32xbf16>, vector<8x32xf32> -> vector<8x32xf32>
    %34 = arith.addf %4, %33 : vector<8x32xf32>
    %c1 = arith.constant 1 : index
    %c0_24 = arith.constant 0 : index
    %c0_25 = arith.constant 0 : index
    %35 = vector.load %arg2[%c1, %c0_24, %c0_25] : memref<4x32x8xbf16, #tpu.memory_space<vmem>>, vector<1x32x8xbf16>
    %36 = vector.shape_cast %35 : vector<1x32x8xbf16> to vector<32x8xbf16>
    %cst_26 = arith.constant dense<0.000000e+00> : vector<8x8xf32>
    %37 = tpu.matmul %1, %36, %cst_26 {dimension_numbers = #tpu.dot_dimension_numbers<[1], [0], [0], [1], [0, 0, 1, 1], [], []>} : vector<8x32xbf16>, vector<32x8xbf16>, vector<8x8xf32> -> vector<8x8xf32>
    %38 = arith.truncf %37 : vector<8x8xf32> to vector<8x8xbf16>
    %c1_27 = arith.constant 1 : index
    %c0_28 = arith.constant 0 : index
    %c0_29 = arith.constant 0 : index
    %39 = vector.load %arg3[%c1_27, %c0_28, %c0_29] : memref<4x32x8xbf16, #tpu.memory_space<vmem>>, vector<1x32x8xbf16>
    %40 = vector.shape_cast %39 : vector<1x32x8xbf16> to vector<32x8xbf16>
    %cst_30 = arith.constant dense<0.000000e+00> : vector<8x8xf32>
    %41 = tpu.matmul %1, %40, %cst_30 {dimension_numbers = #tpu.dot_dimension_numbers<[1], [0], [0], [1], [0, 0, 1, 1], [], []>} : vector<8x32xbf16>, vector<32x8xbf16>, vector<8x8xf32> -> vector<8x8xf32>
    %42 = arith.truncf %41 : vector<8x8xf32> to vector<8x8xbf16>
    %c1_31 = arith.constant 1 : index
    %c0_32 = arith.constant 0 : index
    %c0_33 = arith.constant 0 : index
    %43 = vector.load %arg4[%c1_31, %c0_32, %c0_33] : memref<4x32x8xbf16, #tpu.memory_space<vmem>>, vector<1x32x8xbf16>
    %44 = vector.shape_cast %43 : vector<1x32x8xbf16> to vector<32x8xbf16>
    %cst_34 = arith.constant dense<0.000000e+00> : vector<8x8xf32>
    %45 = tpu.matmul %1, %44, %cst_34 {dimension_numbers = #tpu.dot_dimension_numbers<[1], [0], [0], [1], [0, 0, 1, 1], [], []>} : vector<8x32xbf16>, vector<32x8xbf16>, vector<8x8xf32> -> vector<8x8xf32>
    %46 = arith.truncf %45 : vector<8x8xf32> to vector<8x8xbf16>
    %cst_35 = arith.constant dense<0.000000e+00> : vector<8x8xf32>
    %47 = tpu.matmul %38, %42, %cst_35 {dimension_numbers = #tpu.dot_dimension_numbers<[1], [1], [0], [0], [0, 0, 1, 0], [], []>} : vector<8x8xbf16>, vector<8x8xbf16>, vector<8x8xf32> -> vector<8x8xf32>
    %cst_36 = arith.constant dense<0xFF800000> : vector<8xf32>
    %48 = vector.multi_reduction <maximumf>, %47, %cst_36 [1] : vector<8x8xf32> to vector<8xf32>
    %49 = vector.shape_cast %48 : vector<8xf32> to vector<8x1xf32>
    %50 = vector.broadcast %49 : vector<8x1xf32> to vector<8x8xf32>
    %51 = arith.subf %47, %50 : vector<8x8xf32>
    %52 = math.exp %51 : vector<8x8xf32>
    %cst_37 = arith.constant dense<0.000000e+00> : vector<8xf32>
    %53 = vector.multi_reduction <add>, %52, %cst_37 [1] : vector<8x8xf32> to vector<8xf32>
    %54 = vector.shape_cast %53 : vector<8xf32> to vector<8x1xf32>
    %55 = tpu.reciprocal %54 {approx = true} : vector<8x1xf32> -> vector<8x1xf32>
    %56 = vector.broadcast %55 : vector<8x1xf32> to vector<8x8xf32>
    %57 = arith.mulf %52, %56 : vector<8x8xf32>
    %58 = arith.truncf %57 : vector<8x8xf32> to vector<8x8xbf16>
    %cst_38 = arith.constant dense<0.000000e+00> : vector<8x8xf32>
    %59 = tpu.matmul %58, %46, %cst_38 {dimension_numbers = #tpu.dot_dimension_numbers<[1], [0], [0], [1], [0, 0, 1, 1], [], []>} : vector<8x8xbf16>, vector<8x8xbf16>, vector<8x8xf32> -> vector<8x8xf32>
    %60 = arith.truncf %59 : vector<8x8xf32> to vector<8x8xbf16>
    %c1_39 = arith.constant 1 : index
    %c0_40 = arith.constant 0 : index
    %c0_41 = arith.constant 0 : index
    %61 = vector.load %arg5[%c1_39, %c0_40, %c0_41] : memref<4x8x32xbf16, #tpu.memory_space<vmem>>, vector<1x8x32xbf16>
    %62 = vector.shape_cast %61 : vector<1x8x32xbf16> to vector<8x32xbf16>
    %cst_42 = arith.constant dense<0.000000e+00> : vector<8x32xf32>
    %63 = tpu.matmul %60, %62, %cst_42 {dimension_numbers = #tpu.dot_dimension_numbers<[1], [0], [0], [1], [0, 0, 1, 1], [], []>} : vector<8x8xbf16>, vector<8x32xbf16>, vector<8x32xf32> -> vector<8x32xf32>
    %64 = arith.addf %34, %63 : vector<8x32xf32>
    %c2 = arith.constant 2 : index
    %c0_43 = arith.constant 0 : index
    %c0_44 = arith.constant 0 : index
    %65 = vector.load %arg2[%c2, %c0_43, %c0_44] : memref<4x32x8xbf16, #tpu.memory_space<vmem>>, vector<1x32x8xbf16>
    %66 = vector.shape_cast %65 : vector<1x32x8xbf16> to vector<32x8xbf16>
    %cst_45 = arith.constant dense<0.000000e+00> : vector<8x8xf32>
    %67 = tpu.matmul %1, %66, %cst_45 {dimension_numbers = #tpu.dot_dimension_numbers<[1], [0], [0], [1], [0, 0, 1, 1], [], []>} : vector<8x32xbf16>, vector<32x8xbf16>, vector<8x8xf32> -> vector<8x8xf32>
    %68 = arith.truncf %67 : vector<8x8xf32> to vector<8x8xbf16>
    %c2_46 = arith.constant 2 : index
    %c0_47 = arith.constant 0 : index
    %c0_48 = arith.constant 0 : index
    %69 = vector.load %arg3[%c2_46, %c0_47, %c0_48] : memref<4x32x8xbf16, #tpu.memory_space<vmem>>, vector<1x32x8xbf16>
    %70 = vector.shape_cast %69 : vector<1x32x8xbf16> to vector<32x8xbf16>
    %cst_49 = arith.constant dense<0.000000e+00> : vector<8x8xf32>
    %71 = tpu.matmul %1, %70, %cst_49 {dimension_numbers = #tpu.dot_dimension_numbers<[1], [0], [0], [1], [0, 0, 1, 1], [], []>} : vector<8x32xbf16>, vector<32x8xbf16>, vector<8x8xf32> -> vector<8x8xf32>
    %72 = arith.truncf %71 : vector<8x8xf32> to vector<8x8xbf16>
    %c2_50 = arith.constant 2 : index
    %c0_51 = arith.constant 0 : index
    %c0_52 = arith.constant 0 : index
    %73 = vector.load %arg4[%c2_50, %c0_51, %c0_52] : memref<4x32x8xbf16, #tpu.memory_space<vmem>>, vector<1x32x8xbf16>
    %74 = vector.shape_cast %73 : vector<1x32x8xbf16> to vector<32x8xbf16>
    %cst_53 = arith.constant dense<0.000000e+00> : vector<8x8xf32>
    %75 = tpu.matmul %1, %74, %cst_53 {dimension_numbers = #tpu.dot_dimension_numbers<[1], [0], [0], [1], [0, 0, 1, 1], [], []>} : vector<8x32xbf16>, vector<32x8xbf16>, vector<8x8xf32> -> vector<8x8xf32>
    %76 = arith.truncf %75 : vector<8x8xf32> to vector<8x8xbf16>
    %cst_54 = arith.constant dense<0.000000e+00> : vector<8x8xf32>
    %77 = tpu.matmul %68, %72, %cst_54 {dimension_numbers = #tpu.dot_dimension_numbers<[1], [1], [0], [0], [0, 0, 1, 0], [], []>} : vector<8x8xbf16>, vector<8x8xbf16>, vector<8x8xf32> -> vector<8x8xf32>
    %cst_55 = arith.constant dense<0xFF800000> : vector<8xf32>
    %78 = vector.multi_reduction <maximumf>, %77, %cst_55 [1] : vector<8x8xf32> to vector<8xf32>
    %79 = vector.shape_cast %78 : vector<8xf32> to vector<8x1xf32>
    %80 = vector.broadcast %79 : vector<8x1xf32> to vector<8x8xf32>
    %81 = arith.subf %77, %80 : vector<8x8xf32>
    %82 = math.exp %81 : vector<8x8xf32>
    %cst_56 = arith.constant dense<0.000000e+00> : vector<8xf32>
    %83 = vector.multi_reduction <add>, %82, %cst_56 [1] : vector<8x8xf32> to vector<8xf32>
    %84 = vector.shape_cast %83 : vector<8xf32> to vector<8x1xf32>
    %85 = tpu.reciprocal %84 {approx = true} : vector<8x1xf32> -> vector<8x1xf32>
    %86 = vector.broadcast %85 : vector<8x1xf32> to vector<8x8xf32>
    %87 = arith.mulf %82, %86 : vector<8x8xf32>
    %88 = arith.truncf %87 : vector<8x8xf32> to vector<8x8xbf16>
    %cst_57 = arith.constant dense<0.000000e+00> : vector<8x8xf32>
    %89 = tpu.matmul %88, %76, %cst_57 {dimension_numbers = #tpu.dot_dimension_numbers<[1], [0], [0], [1], [0, 0, 1, 1], [], []>} : vector<8x8xbf16>, vector<8x8xbf16>, vector<8x8xf32> -> vector<8x8xf32>
    %90 = arith.truncf %89 : vector<8x8xf32> to vector<8x8xbf16>
    %c2_58 = arith.constant 2 : index
    %c0_59 = arith.constant 0 : index
    %c0_60 = arith.constant 0 : index
    %91 = vector.load %arg5[%c2_58, %c0_59, %c0_60] : memref<4x8x32xbf16, #tpu.memory_space<vmem>>, vector<1x8x32xbf16>
    %92 = vector.shape_cast %91 : vector<1x8x32xbf16> to vector<8x32xbf16>
    %cst_61 = arith.constant dense<0.000000e+00> : vector<8x32xf32>
    %93 = tpu.matmul %90, %92, %cst_61 {dimension_numbers = #tpu.dot_dimension_numbers<[1], [0], [0], [1], [0, 0, 1, 1], [], []>} : vector<8x8xbf16>, vector<8x32xbf16>, vector<8x32xf32> -> vector<8x32xf32>
    %94 = arith.addf %64, %93 : vector<8x32xf32>
    %c3 = arith.constant 3 : index
    %c0_62 = arith.constant 0 : index
    %c0_63 = arith.constant 0 : index
    %95 = vector.load %arg2[%c3, %c0_62, %c0_63] : memref<4x32x8xbf16, #tpu.memory_space<vmem>>, vector<1x32x8xbf16>
    %96 = vector.shape_cast %95 : vector<1x32x8xbf16> to vector<32x8xbf16>
    %cst_64 = arith.constant dense<0.000000e+00> : vector<8x8xf32>
    %97 = tpu.matmul %1, %96, %cst_64 {dimension_numbers = #tpu.dot_dimension_numbers<[1], [0], [0], [1], [0, 0, 1, 1], [], []>} : vector<8x32xbf16>, vector<32x8xbf16>, vector<8x8xf32> -> vector<8x8xf32>
    %98 = arith.truncf %97 : vector<8x8xf32> to vector<8x8xbf16>
    %c3_65 = arith.constant 3 : index
    %c0_66 = arith.constant 0 : index
    %c0_67 = arith.constant 0 : index
    %99 = vector.load %arg3[%c3_65, %c0_66, %c0_67] : memref<4x32x8xbf16, #tpu.memory_space<vmem>>, vector<1x32x8xbf16>
    %100 = vector.shape_cast %99 : vector<1x32x8xbf16> to vector<32x8xbf16>
    %cst_68 = arith.constant dense<0.000000e+00> : vector<8x8xf32>
    %101 = tpu.matmul %1, %100, %cst_68 {dimension_numbers = #tpu.dot_dimension_numbers<[1], [0], [0], [1], [0, 0, 1, 1], [], []>} : vector<8x32xbf16>, vector<32x8xbf16>, vector<8x8xf32> -> vector<8x8xf32>
    %102 = arith.truncf %101 : vector<8x8xf32> to vector<8x8xbf16>
    %c3_69 = arith.constant 3 : index
    %c0_70 = arith.constant 0 : index
    %c0_71 = arith.constant 0 : index
    %103 = vector.load %arg4[%c3_69, %c0_70, %c0_71] : memref<4x32x8xbf16, #tpu.memory_space<vmem>>, vector<1x32x8xbf16>
    %104 = vector.shape_cast %103 : vector<1x32x8xbf16> to vector<32x8xbf16>
    %cst_72 = arith.constant dense<0.000000e+00> : vector<8x8xf32>
    %105 = tpu.matmul %1, %104, %cst_72 {dimension_numbers = #tpu.dot_dimension_numbers<[1], [0], [0], [1], [0, 0, 1, 1], [], []>} : vector<8x32xbf16>, vector<32x8xbf16>, vector<8x8xf32> -> vector<8x8xf32>
    %106 = arith.truncf %105 : vector<8x8xf32> to vector<8x8xbf16>
    %cst_73 = arith.constant dense<0.000000e+00> : vector<8x8xf32>
    %107 = tpu.matmul %98, %102, %cst_73 {dimension_numbers = #tpu.dot_dimension_numbers<[1], [1], [0], [0], [0, 0, 1, 0], [], []>} : vector<8x8xbf16>, vector<8x8xbf16>, vector<8x8xf32> -> vector<8x8xf32>
    %cst_74 = arith.constant dense<0xFF800000> : vector<8xf32>
    %108 = vector.multi_reduction <maximumf>, %107, %cst_74 [1] : vector<8x8xf32> to vector<8xf32>
    %109 = vector.shape_cast %108 : vector<8xf32> to vector<8x1xf32>
    %110 = vector.broadcast %109 : vector<8x1xf32> to vector<8x8xf32>
    %111 = arith.subf %107, %110 : vector<8x8xf32>
    %112 = math.exp %111 : vector<8x8xf32>
    %cst_75 = arith.constant dense<0.000000e+00> : vector<8xf32>
    %113 = vector.multi_reduction <add>, %112, %cst_75 [1] : vector<8x8xf32> to vector<8xf32>
    %114 = vector.shape_cast %113 : vector<8xf32> to vector<8x1xf32>
    %115 = tpu.reciprocal %114 {approx = true} : vector<8x1xf32> -> vector<8x1xf32>
    %116 = vector.broadcast %115 : vector<8x1xf32> to vector<8x8xf32>
    %117 = arith.mulf %112, %116 : vector<8x8xf32>
    %118 = arith.truncf %117 : vector<8x8xf32> to vector<8x8xbf16>
    %cst_76 = arith.constant dense<0.000000e+00> : vector<8x8xf32>
    %119 = tpu.matmul %118, %106, %cst_76 {dimension_numbers = #tpu.dot_dimension_numbers<[1], [0], [0], [1], [0, 0, 1, 1], [], []>} : vector<8x8xbf16>, vector<8x8xbf16>, vector<8x8xf32> -> vector<8x8xf32>
    %120 = arith.truncf %119 : vector<8x8xf32> to vector<8x8xbf16>
    %c3_77 = arith.constant 3 : index
    %c0_78 = arith.constant 0 : index
    %c0_79 = arith.constant 0 : index
    %121 = vector.load %arg5[%c3_77, %c0_78, %c0_79] : memref<4x8x32xbf16, #tpu.memory_space<vmem>>, vector<1x8x32xbf16>
    %122 = vector.shape_cast %121 : vector<1x8x32xbf16> to vector<8x32xbf16>
    %cst_80 = arith.constant dense<0.000000e+00> : vector<8x32xf32>
    %123 = tpu.matmul %120, %122, %cst_80 {dimension_numbers = #tpu.dot_dimension_numbers<[1], [0], [0], [1], [0, 0, 1, 1], [], []>} : vector<8x8xbf16>, vector<8x32xbf16>, vector<8x32xf32> -> vector<8x32xf32>
    %124 = arith.addf %94, %123 : vector<8x32xf32>
    %125 = vector.shape_cast %3 : vector<32xf32> to vector<1x32xf32>
    %126 = vector.broadcast %125 : vector<1x32xf32> to vector<8x32xf32>
    %127 = arith.addf %124, %126 : vector<8x32xf32>
    %c0_81 = arith.constant 0 : index
    %c0_82 = arith.constant 0 : index
    %c0_83 = arith.constant 0 : index
    %128 = vector.load %arg7[%c0_81, %c0_82, %c0_83] : memref<1x8x32xf32, #tpu.memory_space<vmem>>, vector<1x8x32xf32>
    %129 = vector.shape_cast %128 : vector<1x8x32xf32> to vector<8x32xf32>
    %130 = vector.shape_cast %127 : vector<8x32xf32> to vector<1x8x32xf32>
    tpu.vector_store %arg7[%c0_81, %c0_82, %c0_83], %130 {strides = array<i32>} : memref<1x8x32xf32, #tpu.memory_space<vmem>>, vector<1x8x32xf32>,
    return
  }
  func.func @transform_0(%arg0: i32) -> (i32, i32, i32) {
    %c0_i32 = arith.constant 0 : i32
    %c0_i32_0 = arith.constant 0 : i32
    %c0_i32_1 = arith.constant 0 : i32
    return %arg0, %c0_i32, %c0_i32_0 : i32, i32, i32
  }
  func.func @transform_1(%arg0: i32) -> (i32, i32, i32) {
    %c0_i32 = arith.constant 0 : i32
    %c0_i32_0 = arith.constant 0 : i32
    %c0_i32_1 = arith.constant 0 : i32
    %c0_i32_2 = arith.constant 0 : i32
    return %c0_i32, %c0_i32_0, %c0_i32_1 : i32, i32, i32
  }
  func.func @transform_2(%arg0: i32) -> (i32, i32, i32) {
    %c0_i32 = arith.constant 0 : i32
    %c0_i32_0 = arith.constant 0 : i32
    %c0_i32_1 = arith.constant 0 : i32
    %c0_i32_2 = arith.constant 0 : i32
    return %c0_i32, %c0_i32_0, %c0_i32_1 : i32, i32, i32
  }
  func.func @transform_3(%arg0: i32) -> (i32, i32, i32) {
    %c0_i32 = arith.constant 0 : i32
    %c0_i32_0 = arith.constant 0 : i32
    %c0_i32_1 = arith.constant 0 : i32
    %c0_i32_2 = arith.constant 0 : i32
    return %c0_i32, %c0_i32_0, %c0_i32_1 : i32, i32, i32
  }
  func.func @transform_4(%arg0: i32) -> (i32, i32, i32) {
    %c0_i32 = arith.constant 0 : i32
    %c0_i32_0 = arith.constant 0 : i32
    %c0_i32_1 = arith.constant 0 : i32
    %c0_i32_2 = arith.constant 0 : i32
    return %c0_i32, %c0_i32_0, %c0_i32_1 : i32, i32, i32
  }
  func.func @transform_5(%arg0: i32) -> (i32, i32) {
    %c0_i32 = arith.constant 0 : i32
    %c0_i32_0 = arith.constant 0 : i32
    %c0_i32_1 = arith.constant 0 : i32
    return %c0_i32, %c0_i32_0 : i32, i32
  }
  func.func @transform_6(%arg0: i32) -> (i32, i32, i32) {
    %c0_i32 = arith.constant 0 : i32
    %c0_i32_0 = arith.constant 0 : i32
    %c0_i32_1 = arith.constant 0 : i32
    return %arg0, %c0_i32, %c0_i32_0 : i32, i32, i32
  }
}

</mosaic_0001>

<llo_original>
// kernel: tpu_custom_call.1
$region0: #{tpu_custom_call.1}
  #allocation0 [shape = 'u32[]', space=smem, size = 0x4, offset = 0x4, fixed_abs, tag = 'smem constant byte address 0x4 - core index']
  #allocation1 [shape = 'u32[144,128]{1,0:T(1,128)}', space=vmem, size = 0x12000, scoped, tag = 'internal scratch']
  %s0 = inlined_call_operand.vmem [shape: bf16[2,8,32], index: 0, kind: input, shape index: {}]
  %s1 = inlined_call_operand.vmem [shape: bf16[4,32,8], index: 1, kind: input, shape index: {}]
  %s2 = inlined_call_operand.vmem [shape: bf16[4,32,8], index: 2, kind: input, shape index: {}]
  %s3 = inlined_call_operand.vmem [shape: bf16[4,32,8], index: 3, kind: input, shape index: {}]
  %s4 = inlined_call_operand.vmem [shape: bf16[4,8,32], index: 4, kind: input, shape index: {}]
  %s5 = inlined_call_operand.vmem [shape: f32[1,32], index: 5, kind: input, shape index: {}]
  %s6 = inlined_call_operand.hbm [shape: f32[2,8,32], index: 6, kind: output, shape index: {}]
  %s7 = sld [smem:[#allocation0]]
  $region57: #{tpu_custom_call.1} parent=0
    _
  %s9 = ssub.s32 1, %s7
  %s10 = scalar_select 0, %s9, %s7
  $region1: #{tpu_custom_call.1} parent=0
    #allocation2 [shape = 'u8[8192]{0}', space=vmem, size = 0x2000, scoped, tag = 'output window, operand 0']
    #allocation3 [shape = 's32[2]{0}', space=sflag, size = 0x8, scoped, tag = 'scoped memory for tpu_custom_call.1']
    %11 = vsyncpa [#allocation3], 0
    %s12 = scalar_lea.sflag [#allocation3], 1
    %13 = vsyncpa %s12, 0
    loop: start=0, step=1, limit=4
    $region2: #{tpu_custom_call.1} parent=1 // loop_pre_header
      _
    $region3: #{tpu_custom_call.1} parent=1 // loop_header
      %s15 = sphi 0, %s19
      %p16 = scmp.ge.s32.totalorder %s15, 4
      %s25 = sphi 0, %s27
      %s28 = sphi 0, %s25
      %s29 = sphi 0, %s28
      %s45 = sphi 0, %s29
      %s49 = sphi 0, %s49
      %s51 = sphi 0, %s49
      %s52 = sphi 0, %s51
      %s66 = sphi 0, %s52
      %s70 = sphi 0, %s70
      %s72 = sphi 0, %s70
      %s73 = sphi 0, %s72
      %s87 = sphi 0, %s73
      %s91 = sphi 0, %s91
      %s93 = sphi 0, %s91
      %s94 = sphi 0, %s93
      %s108 = sphi 0, %s94
      %s112 = sphi 0, %s112
      %s114 = sphi 0, %s112
      %s115 = sphi 0, %s114
      %s129 = sphi 0, %s115
      %s133 = sphi 0, %s133
      %s135 = sphi 0, %s133
      %s136 = sphi 0, %s135
      %s150 = sphi 0, %s136
      %s156 = sphi 0, %s158
      %s159 = sphi 0, %s156
      %s160 = sphi 0, %s159
      %s176 = sphi 0, %s160
    $region4: #{tpu_custom_call.1} parent=1 // loop_header_branch
      %18 = sbr.rel (%p16) target = $region8
    $region5: #{tpu_custom_call.1} parent=1 // loop_body
      %s20 = ssub.s32 %s15, 1
      %s21 = ssub.s32 %s15, 2
      %s22 = sadd.s32 %s15, 1
      %s23 = ssub.s32 %s15, %s22
      %p24 = scmp.eq.s32.totalorder %s23, 0
      %s26 = sadd.s32 %s25, 1
      %s27 = scalar_select %p24, %s25, %s26
      %p30 = pneg %p24
      %p31 = scmp.eq.s32.totalorder %s15, 1
      %p32 = por %p30, %p31
      %p33 = scmp.ne.s32.totalorder %s25, %s28
      %p34 = scmp.eq.s32.totalorder %s15, 0
      %p35 = por %p33, %p34
      %p36 = scmp.ne.s32.totalorder %s25, %s28
      %p37 = scmp.eq.s32.totalorder %s20, 1
      %p38 = por %p36, %p37
      %p39 = scmp.ne.s32.totalorder %s28, %s29
      %p40 = scmp.eq.s32.totalorder %s20, 0
      %p41 = por %p39, %p40
      %p42 = scmp.ne.s32.totalorder %s28, %s29
      %p43 = scmp.eq.s32.totalorder %s21, 1
      %p44 = por %p42, %p43
      %p46 = scmp.ne.s32.totalorder %s29, %s45
      %p47 = scmp.eq.s32.totalorder %s21, 0
      %p48 = por %p46, %p47
      %s50 = sadd.s32 %s49, 1
      %p53 = scmp.eq.s32.totalorder %s15, 1
      %p54 = scmp.ne.s32.totalorder %s49, %s51
      %p55 = scmp.eq.s32.totalorder %s15, 0
      %p56 = por %p54, %p55
      %p57 = scmp.ne.s32.totalorder %s49, %s51
      %p58 = scmp.eq.s32.totalorder %s20, 1
      %p59 = por %p57, %p58
      %p60 = scmp.ne.s32.totalorder %s51, %s52
      %p61 = scmp.eq.s32.totalorder %s20, 0
      %p62 = por %p60, %p61
      %p63 = scmp.ne.s32.totalorder %s51, %s52
      %p64 = scmp.eq.s32.totalorder %s21, 1
      %p65 = por %p63, %p64
      %p67 = scmp.ne.s32.totalorder %s52, %s66
      %p68 = scmp.eq.s32.totalorder %s21, 0
      %p69 = por %p67, %p68
      %s71 = sadd.s32 %s70, 1
      %p74 = scmp.eq.s32.totalorder %s15, 1
      %p75 = scmp.ne.s32.totalorder %s70, %s72
      %p76 = scmp.eq.s32.totalorder %s15, 0
      %p77 = por %p75, %p76
      %p78 = scmp.ne.s32.totalorder %s70, %s72
      %p79 = scmp.eq.s32.totalorder %s20, 1
      %p80 = por %p78, %p79
      %p81 = scmp.ne.s32.totalorder %s72, %s73
      %p82 = scmp.eq.s32.totalorder %s20, 0
      %p83 = por %p81, %p82
      %p84 = scmp.ne.s32.totalorder %s72, %s73
      %p85 = scmp.eq.s32.totalorder %s21, 1
      %p86 = por %p84, %p85
      %p88 = scmp.ne.s32.totalorder %s73, %s87
      %p89 = scmp.eq.s32.totalorder %s21, 0
      %p90 = por %p88, %p89
      %s92 = sadd.s32 %s91, 1
      %p95 = scmp.eq.s32.totalorder %s15, 1
      %p96 = scmp.ne.s32.totalorder %s91, %s93
      %p97 = scmp.eq.s32.totalorder %s15, 0
      %p98 = por %p96, %p97
      %p99 = scmp.ne.s32.totalorder %s91, %s93
      %p100 = scmp.eq.s32.totalorder %s20, 1
      %p101 = por %p99, %p100
      %p102 = scmp.ne.s32.totalorder %s93, %s94
      %p103 = scmp.eq.s32.totalorder %s20, 0
      %p104 = por %p102, %p103
      %p105 = scmp.ne.s32.totalorder %s93, %s94
      %p106 = scmp.eq.s32.totalorder %s21, 1
      %p107 = por %p105, %p106
      %p109 = scmp.ne.s32.totalorder %s94, %s108
      %p110 = scmp.eq.s32.totalorder %s21, 0
      %p111 = por %p109, %p110
      %s113 = sadd.s32 %s112, 1
      %p116 = scmp.eq.s32.totalorder %s15, 1
      %p117 = scmp.ne.s32.totalorder %s112, %s114
      %p118 = scmp.eq.s32.totalorder %s15, 0
      %p119 = por %p117, %p118
      %p120 = scmp.ne.s32.totalorder %s112, %s114
      %p121 = scmp.eq.s32.totalorder %s20, 1
      %p122 = por %p120, %p121
      %p123 = scmp.ne.s32.totalorder %s114, %s115
      %p124 = scmp.eq.s32.totalorder %s20, 0
      %p125 = por %p123, %p124
      %p126 = scmp.ne.s32.totalorder %s114, %s115
      %p127 = scmp.eq.s32.totalorder %s21, 1
      %p128 = por %p126, %p127
      %p130 = scmp.ne.s32.totalorder %s115, %s129
      %p131 = scmp.eq.s32.totalorder %s21, 0
      %p132 = por %p130, %p131
      %s134 = sadd.s32 %s133, 1
      %p137 = scmp.eq.s32.totalorder %s15, 1
      %p138 = scmp.ne.s32.totalorder %s133, %s135
      %p139 = scmp.eq.s32.totalorder %s15, 0
      %p140 = por %p138, %p139
      %p141 = scmp.ne.s32.totalorder %s133, %s135
      %p142 = scmp.eq.s32.totalorder %s20, 1
      %p143 = por %p141, %p142
      %p144 = scmp.ne.s32.totalorder %s135, %s136
      %p145 = scmp.eq.s32.totalorder %s20, 0
      %p146 = por %p144, %p145
      %p147 = scmp.ne.s32.totalorder %s135, %s136
      %p148 = scmp.eq.s32.totalorder %s21, 1
      %p149 = por %p147, %p148
      %p151 = scmp.ne.s32.totalorder %s136, %s150
      %p152 = scmp.eq.s32.totalorder %s21, 0
      %p153 = por %p151, %p152
      %s154 = ssub.s32 %s15, %s22
      %p155 = scmp.eq.s32.totalorder %s154, 0
      %s157 = sadd.s32 %s156, 1
      %s158 = scalar_select %p155, %s156, %s157
      %p161 = pneg %p155
      %p162 = scmp.eq.s32.totalorder %s15, 1
      %p163 = por %p161, %p162
      %p164 = scmp.ne.s32.totalorder %s156, %s159
      %p165 = scmp.eq.s32.totalorder %s15, 0
      %p166 = por %p164, %p165
      %p167 = scmp.ne.s32.totalorder %s156, %s159
      %p168 = scmp.eq.s32.totalorder %s20, 1
      %p169 = por %p167, %p168
      %p170 = scmp.ne.s32.totalorder %s159, %s160
      %p171 = scmp.eq.s32.totalorder %s20, 0
      %p172 = por %p170, %p171
      %p173 = scmp.ne.s32.totalorder %s159, %s160
      %p174 = scmp.eq.s32.totalorder %s21, 1
      %p175 = por %p173, %p174
      %p177 = scmp.ne.s32.totalorder %s160, %s176
      %p178 = scmp.eq.s32.totalorder %s21, 0
      %p179 = por %p177, %p178
      %p180 = scmp.le.s32.totalorder 1, %s15
      %p181 = scmp.lt.s32.totalorder %s15, 3
      %p182 = pnand %p180, %p181
      %p183 = pneg %p182
      // Predicated region
      $region9: #{tpu_custom_call.1} parent=5 // pred_check
        _
      $region10: #{tpu_custom_call.1} parent=5 // pred_check_branch
        %185 = sbr.rel (%p182) target = $region12
      $region11: #{tpu_custom_call.1} parent=5 // pred_region
        %s186 = ssub.s32 %s15, 1
        // Predicated region
        $region13: #{tpu_custom_call.1} parent=11 // pred_check
          %p187 = pneg %p62
        $region14: #{tpu_custom_call.1} parent=11 // pred_check_branch
          %189 = sbr.rel (%p187) target = $region16
        $region15: #{tpu_custom_call.1} parent=11 // pred_region
          _
        $region16: #{tpu_custom_call.1} parent=11 // pred_fallthru
          _
        // Predicated region
        $region17: #{tpu_custom_call.1} parent=11 // pred_check
          %p190 = pneg %p83
        $region18: #{tpu_custom_call.1} parent=11 // pred_check_branch
          %192 = sbr.rel (%p190) target = $region20
        $region19: #{tpu_custom_call.1} parent=11 // pred_region
          _
        $region20: #{tpu_custom_call.1} parent=11 // pred_fallthru
          _
        // Predicated region
        $region21: #{tpu_custom_call.1} parent=11 // pred_check
          %p193 = pneg %p104
        $region22: #{tpu_custom_call.1} parent=11 // pred_check_branch
          %195 = sbr.rel (%p193) target = $region24
        $region23: #{tpu_custom_call.1} parent=11 // pred_region
          _
        $region24: #{tpu_custom_call.1} parent=11 // pred_fallthru
          _
        // Predicated region
        $region25: #{tpu_custom_call.1} parent=11 // pred_check
          %p196 = pneg %p125
        $region26: #{tpu_custom_call.1} parent=11 // pred_check_branch
          %198 = sbr.rel (%p196) target = $region28
        $region27: #{tpu_custom_call.1} parent=11 // pred_region
          _
        $region28: #{tpu_custom_call.1} parent=11 // pred_fallthru
          _
        // Predicated region
        $region29: #{tpu_custom_call.1} parent=11 // pred_check
          %p199 = pneg %p146
        $region30: #{tpu_custom_call.1} parent=11 // pred_check_branch
          %201 = sbr.rel (%p199) target = $region32
        $region31: #{tpu_custom_call.1} parent=11 // pred_region
          _
        $region32: #{tpu_custom_call.1} parent=11 // pred_fallthru
          _
      $region12: #{tpu_custom_call.1} parent=5 // pred_fallthru
        _
      %p202 = scmp.lt.s32.totalorder %s15, 2
      // Predicated region
      $region33: #{tpu_custom_call.1} parent=5 // pred_check
        %p203 = pneg %p202
      $region34: #{tpu_custom_call.1} parent=5 // pred_check_branch
        %205 = sbr.rel (%p203) target = $region36
      $region35: #{tpu_custom_call.1} parent=5 // pred_region
        // Predicated region
        $region37: #{tpu_custom_call.1} parent=35 // pred_check
          %p206 = pneg %p35
        $region38: #{tpu_custom_call.1} parent=35 // pred_check_branch
          %208 = sbr.rel (%p206) target = $region40
        $region39: #{tpu_custom_call.1} parent=35 // pred_region
          %p209 = scmp.lt.s32.totalorder %s15, 1
          %s210 = scalar_select %p209, %s15, 1
          %s211 = smul.addr %s210, 4
          %s212 = scalar_lea.vmem %s0, %s211
        $region40: #{tpu_custom_call.1} parent=35 // pred_fallthru
          _
      $region36: #{tpu_custom_call.1} parent=5 // pred_fallthru
        _
      %p213 = scmp.le.s32.totalorder 1, %s15
      %p214 = scmp.lt.s32.totalorder %s15, 3
      %p215 = pnand %p213, %p214
      %p216 = pneg %p215
      // Predicated region
      $region41: #{tpu_custom_call.1} parent=5 // pred_check
        _
      $region42: #{tpu_custom_call.1} parent=5 // pred_check_branch
        %218 = sbr.rel (%p215) target = $region44
      $region43: #{tpu_custom_call.1} parent=5 // pred_region
        %s219 = ssub.s32 %s15, 1
        %p220 = scmp.lt.s32.totalorder %s20, 1
        %s221 = scalar_select %p220, %s20, 1
        %s222 = smul.addr %s221, 4
        %s223 = scalar_lea.vmem %s0, %s222
        %p224 = pneg %p41
        %p225 = pneg %p38
        %p226 = pneg %p62
        %p227 = pneg %p59
        %p228 = pneg %p83
        %p229 = pneg %p80
        %p230 = pneg %p104
        %p231 = pneg %p101
        %p232 = pneg %p125
        %p233 = pneg %p122
        %p234 = pneg %p146
        %p235 = pneg %p143
        %p236 = pneg %p172
        %p237 = pneg %p169
        %s238 = sand.u32 %s159, 1
        %s239 = scalar_lea.sflag [#allocation3], %s238
        %s240 = sand.u32 %s159, 1
        %s241 = smul.addr %s240, 8
        %s242 = scalar_lea.vmem [#allocation2], %s241
        %p243 = scmp.lt.s32.totalorder %s20, 1
        %s244 = scalar_select %p243, %s20, 1
        %s245 = smul.addr %s244, 4
        %s246 = scalar_lea.vmem %s0, %s245
        %v248 = vld [vmem:[%s246] sm:$0xf]
        %v249 = vld [vmem:[%s5] sm:$0x1]
        %v250 = vld [vmem:[%s1] sm:$0xf]
        %v251 = vld [vmem:[%s1 + $0x4] sm:$0xf]
        %v252 = vld [vmem:[%s1 + $0x8] sm:$0xf]
        %v253 = vld [vmem:[%s1 + $0xc] sm:$0xf]
        %v258 = vunpack.c.l.b16 %v250
        %v259 = vunpack.c.l.b16 %v251
        %v260 = vunpack.c.l.b16 %v252
        %v261 = vunpack.c.l.b16 %v253
        %v262 = vpack.c.b16 %v259, %v258
        %v263 = vpack.c.b16 %v261, %v260
        %vm266 = vcmask 261120
        %v268 = vsel %vm266, %v248, 0
        %270 = vmatprep.subr.bf16.mxu0 0
        %271 = vmatpush1.bf16.msra.mxu0 %v262
        %272 = vmatprep.subr.bf16.mxu0 0
        %273 = vmatpush1.bf16.msra.mxu0 %v263
        %274 = vmatprep.subr.bf16.mxu0 0
        %275 = vmatpush1.bf16.msra.mxu0 0
        %276 = vmatprep.subr.bf16.mxu0 0
        %277 = vmatpush1.bf16.msra.mxu0 0
        %278 = vmatprep.subr.bf16.mxu0 0
        %279 = vmatpush1.bf16.msra.mxu0 0
        %280 = vmatprep.subr.bf16.mxu0 0
        %281 = vmatpush1.bf16.msra.mxu0 0
        %282 = vmatprep.subr.bf16.mxu0 0
        %283 = vmatpush1.bf16.msra.mxu0 0
        %284 = vmatprep.subr.bf16.mxu0 0
        %285 = vmatpush1.bf16.msra.mxu0 0
        %286 = vmatprep.subr.bf16.mxu0 0
        %287 = vmatpush1.bf16.msra.mxu0 0
        %288 = vmatprep.subr.bf16.mxu0 0
        %289 = vmatpush1.bf16.msra.mxu0 0
        %290 = vmatprep.subr.bf16.mxu0 0
        %291 = vmatpush1.bf16.msra.mxu0 0
        %292 = vmatprep.subr.bf16.mxu0 0
        %293 = vmatpush1.bf16.msra.mxu0 0
        %294 = vmatprep.subr.bf16.mxu0 0
        %295 = vmatpush1.bf16.msra.mxu0 0
        %296 = vmatprep.subr.bf16.mxu0 0
        %297 = vmatpush1.bf16.msra.mxu0 0
        %298 = vmatprep.subr.bf16.mxu0 0
        %299 = vmatpush1.bf16.msra.mxu0 0
        %300 = vmatprep.subr.bf16.mxu0 0
        %301 = vmatpush1.bf16.msra.mxu0 0
        %302 = vmatprep.mubr.bf16.mxu0 0
        %303 = vmatmul.mubr.bf16.gmra.mrb[0].mxu0 %v268
        %v304 = vpop.f32.mrb[0].mxu0
        %v305 = vadd.f32 0.0, %v304
        %v306 = vpop.f32.mrb[0].mxu0
        %v307 = vpop.f32.mrb[0].mxu0
        %v308 = vpop.f32.mrb[0].mxu0
        %309 = vdwg.mxu0
        %v310 = vpack.c.bf16 %v305, %v305
        %v311 = vld [vmem:[%s2] sm:$0xf]
        %v312 = vld [vmem:[%s2 + $0x4] sm:$0xf]
        %v313 = vld [vmem:[%s2 + $0x8] sm:$0xf]
        %v314 = vld [vmem:[%s2 + $0xc] sm:$0xf]
        %v319 = vunpack.c.l.b16 %v311
        %v320 = vunpack.c.l.b16 %v312
        %v321 = vunpack.c.l.b16 %v313
        %v322 = vunpack.c.l.b16 %v314
        %v323 = vpack.c.b16 %v320, %v319
        %v324 = vpack.c.b16 %v322, %v321
        %327 = vmatprep.subr.bf16.mxu0 0
        %328 = vmatpush1.bf16.msra.mxu0 %v323
        %329 = vmatprep.subr.bf16.mxu0 0
        %330 = vmatpush1.bf16.msra.mxu0 %v324
        %331 = vmatprep.subr.bf16.mxu0 0
        %332 = vmatpush1.bf16.msra.mxu0 0
        %333 = vmatprep.subr.bf16.mxu0 0
        %334 = vmatpush1.bf16.msra.mxu0 0
        %335 = vmatprep.subr.bf16.mxu0 0
        %336 = vmatpush1.bf16.msra.mxu0 0
        %337 = vmatprep.subr.bf16.mxu0 0
        %338 = vmatpush1.bf16.msra.mxu0 0
        %339 = vmatprep.subr.bf16.mxu0 0
        %340 = vmatpush1.bf16.msra.mxu0 0
        %341 = vmatprep.subr.bf16.mxu0 0
        %342 = vmatpush1.bf16.msra.mxu0 0
        %343 = vmatprep.subr.bf16.mxu0 0
        %344 = vmatpush1.bf16.msra.mxu0 0
        %345 = vmatprep.subr.bf16.mxu0 0
        %346 = vmatpush1.bf16.msra.mxu0 0
        %347 = vmatprep.subr.bf16.mxu0 0
        %348 = vmatpush1.bf16.msra.mxu0 0
        %349 = vmatprep.subr.bf16.mxu0 0
        %350 = vmatpush1.bf16.msra.mxu0 0
        %351 = vmatprep.subr.bf16.mxu0 0
        %352 = vmatpush1.bf16.msra.mxu0 0
        %353 = vmatprep.subr.bf16.mxu0 0
        %354 = vmatpush1.bf16.msra.mxu0 0
        %355 = vmatprep.subr.bf16.mxu0 0
        %356 = vmatpush1.bf16.msra.mxu0 0
        %357 = vmatprep.subr.bf16.mxu0 0
        %358 = vmatpush1.bf16.msra.mxu0 0
        %359 = vmatprep.mubr.bf16.mxu0 0
        %360 = vmatmul.mubr.bf16.gmra.mrb[0].mxu0 %v268
        %v361 = vpop.f32.mrb[0].mxu0
        %v362 = vadd.f32 0.0, %v361
        %v363 = vpop.f32.mrb[0].mxu0
        %v364 = vpop.f32.mrb[0].mxu0
        %v365 = vpop.f32.mrb[0].mxu0
        %366 = vdwg.mxu0
        %v367 = vpack.c.bf16 %v362, %v362
        %v368 = vld [vmem:[%s3] sm:$0xf]
        %v369 = vld [vmem:[%s3 + $0x4] sm:$0xf]
        %v370 = vld [vmem:[%s3 + $0x8] sm:$0xf]
        %v371 = vld [vmem:[%s3 + $0xc] sm:$0xf]
        %v376 = vunpack.c.l.b16 %v368
        %v377 = vunpack.c.l.b16 %v369
        %v378 = vunpack.c.l.b16 %v370
        %v379 = vunpack.c.l.b16 %v371
        %v380 = vpack.c.b16 %v377, %v376
        %v381 = vpack.c.b16 %v379, %v378
        %384 = vmatprep.subr.bf16.mxu0 0
        %385 = vmatpush1.bf16.msra.mxu0 %v380
        %386 = vmatprep.subr.bf16.mxu0 0
        %387 = vmatpush1.bf16.msra.mxu0 %v381
        %388 = vmatprep.subr.bf16.mxu0 0
        %389 = vmatpush1.bf16.msra.mxu0 0
        %390 = vmatprep.subr.bf16.mxu0 0
        %391 = vmatpush1.bf16.msra.mxu0 0
        %392 = vmatprep.subr.bf16.mxu0 0
        %393 = vmatpush1.bf16.msra.mxu0 0
        %394 = vmatprep.subr.bf16.mxu0 0
        %395 = vmatpush1.bf16.msra.mxu0 0
        %396 = vmatprep.subr.bf16.mxu0 0
        %397 = vmatpush1.bf16.msra.mxu0 0
        %398 = vmatprep.subr.bf16.mxu0 0
        %399 = vmatpush1.bf16.msra.mxu0 0
        %400 = vmatprep.subr.bf16.mxu0 0
        %401 = vmatpush1.bf16.msra.mxu0 0
        %402 = vmatprep.subr.bf16.mxu0 0
        %403 = vmatpush1.bf16.msra.mxu0 0
        %404 = vmatprep.subr.bf16.mxu0 0
        %405 = vmatpush1.bf16.msra.mxu0 0
        %406 = vmatprep.subr.bf16.mxu0 0
        %407 = vmatpush1.bf16.msra.mxu0 0
        %408 = vmatprep.subr.bf16.mxu0 0
        %409 = vmatpush1.bf16.msra.mxu0 0
        %410 = vmatprep.subr.bf16.mxu0 0
        %411 = vmatpush1.bf16.msra.mxu0 0
        %412 = vmatprep.subr.bf16.mxu0 0
        %413 = vmatpush1.bf16.msra.mxu0 0
        %414 = vmatprep.subr.bf16.mxu0 0
        %415 = vmatpush1.bf16.msra.mxu0 0
        %416 = vmatprep.mubr.bf16.mxu0 0
        %417 = vmatmul.mubr.bf16.gmra.mrb[0].mxu0 %v268
        %v418 = vpop.f32.mrb[0].mxu0
        %v419 = vadd.f32 0.0, %v418
        %v420 = vpop.f32.mrb[0].mxu0
        %v421 = vpop.f32.mrb[0].mxu0
        %v422 = vpop.f32.mrb[0].mxu0
        %423 = vdwg.mxu0
        %v424 = vpack.c.bf16 %v419, %v419
        %vm425 = vcmask 64512
        %v427 = vsel %vm425, %v310, 0
        %v430 = vsel %vm425, %v367, 0
        %432 = vmatprep.subr.bf16.mxu0 0
        %433 = vmatpush1.bf16.xpose.msra.mxu0 %v430
        %434 = vmatprep.subr.bf16.mxu0 0
        %435 = vmatpush1.bf16.xpose.msra.mxu0 0
        %436 = vmatprep.subr.bf16.mxu0 0
        %437 = vmatpush1.bf16.xpose.msra.mxu0 0
        %438 = vmatprep.subr.bf16.mxu0 0
        %439 = vmatpush1.bf16.xpose.msra.mxu0 0
        %440 = vmatprep.subr.bf16.mxu0 0
        %441 = vmatpush1.bf16.xpose.msra.mxu0 0
        %442 = vmatprep.subr.bf16.mxu0 0
        %443 = vmatpush1.bf16.xpose.msra.mxu0 0
        %444 = vmatprep.subr.bf16.mxu0 0
        %445 = vmatpush1.bf16.xpose.msra.mxu0 0
        %446 = vmatprep.subr.bf16.mxu0 0
        %447 = vmatpush1.bf16.xpose.msra.mxu0 0
        %448 = vmatprep.subr.bf16.mxu0 0
        %449 = vmatpush1.bf16.xpose.msra.mxu0 0
        %450 = vmatprep.subr.bf16.mxu0 0
        %451 = vmatpush1.bf16.xpose.msra.mxu0 0
        %452 = vmatprep.subr.bf16.mxu0 0
        %453 = vmatpush1.bf16.xpose.msra.mxu0 0
        %454 = vmatprep.subr.bf16.mxu0 0
        %455 = vmatpush1.bf16.xpose.msra.mxu0 0
        %456 = vmatprep.subr.bf16.mxu0 0
        %457 = vmatpush1.bf16.xpose.msra.mxu0 0
        %458 = vmatprep.subr.bf16.mxu0 0
        %459 = vmatpush1.bf16.xpose.msra.mxu0 0
        %460 = vmatprep.subr.bf16.mxu0 0
        %461 = vmatpush1.bf16.xpose.msra.mxu0 0
        %462 = vmatprep.subr.bf16.mxu0 0
        %463 = vmatpush1.bf16.xpose.msra.mxu0 0
        %464 = vmatprep.mubr.bf16.mxu0 0
        %465 = vmatmul.mubr.bf16.gmra.mrb[0].mxu0 %v427
        %v466 = vpop.f32.mrb[0].mxu0
        %v467 = vadd.f32 0.0, %v466
        %v468 = vpop.f32.mrb[0].mxu0
        %v469 = vpop.f32.mrb[0].mxu0
        %v470 = vpop.f32.mrb[0].mxu0
        %471 = vdwg.mxu0
        %v472 = vsel %vm425, %v467, -inf
        %473 = vmax.xlane.f32.xlu0 %v472
        %v474 = vpop.xlane.xlu0 %473
        %v475 = vsub.f32 %v467, %v474
        %v476 = vmul.f32 %v475, 1.442695
        %v477 = vpow.pop %v476
        %v478 = vsel %vm425, %v477, 0.0
        %479 = vadd.xlane.f32.xlu0 %v478
        %v480 = vpop.xlane.xlu0 %479
        %v481 = vrcp.pop %v480
        %v482 = vmul.f32 %v477, %v481
        %v483 = vpack.c.bf16 %v482, %v482
        %v485 = vsel %vm425, %v483, 0
        %vm487 = vcmask 1043456
        %v489 = vsel %vm487, %v424, 0
        %491 = vmatprep.subr.bf16.mxu0 0
        %492 = vmatpush1.bf16.msra.mxu0 %v489
        %493 = vmatprep.subr.bf16.mxu0 0
        %494 = vmatpush1.bf16.msra.mxu0 0
        %495 = vmatprep.subr.bf16.mxu0 0
        %496 = vmatpush1.bf16.msra.mxu0 0
        %497 = vmatprep.subr.bf16.mxu0 0
        %498 = vmatpush1.bf16.msra.mxu0 0
        %499 = vmatprep.subr.bf16.mxu0 0
        %500 = vmatpush1.bf16.msra.mxu0 0
        %501 = vmatprep.subr.bf16.mxu0 0
        %502 = vmatpush1.bf16.msra.mxu0 0
        %503 = vmatprep.subr.bf16.mxu0 0
        %504 = vmatpush1.bf16.msra.mxu0 0
        %505 = vmatprep.subr.bf16.mxu0 0
        %506 = vmatpush1.bf16.msra.mxu0 0
        %507 = vmatprep.subr.bf16.mxu0 0
        %508 = vmatpush1.bf16.msra.mxu0 0
        %509 = vmatprep.subr.bf16.mxu0 0
        %510 = vmatpush1.bf16.msra.mxu0 0
        %511 = vmatprep.subr.bf16.mxu0 0
        %512 = vmatpush1.bf16.msra.mxu0 0
        %513 = vmatprep.subr.bf16.mxu0 0
        %514 = vmatpush1.bf16.msra.mxu0 0
        %515 = vmatprep.subr.bf16.mxu0 0
        %516 = vmatpush1.bf16.msra.mxu0 0
        %517 = vmatprep.subr.bf16.mxu0 0
        %518 = vmatpush1.bf16.msra.mxu0 0
        %519 = vmatprep.subr.bf16.mxu0 0
        %520 = vmatpush1.bf16.msra.mxu0 0
        %521 = vmatprep.subr.bf16.mxu0 0
        %522 = vmatpush1.bf16.msra.mxu0 0
        %523 = vmatprep.mubr.bf16.mxu0 0
        %524 = vmatmul.mubr.bf16.gmra.mrb[0].mxu0 %v485
        %v525 = vpop.f32.mrb[0].mxu0
        %v526 = vadd.f32 0.0, %v525
        %v527 = vpop.f32.mrb[0].mxu0
        %v528 = vpop.f32.mrb[0].mxu0
        %v529 = vpop.f32.mrb[0].mxu0
        %530 = vdwg.mxu0
        %v531 = vpack.c.bf16 %v526, %v526
        %v532 = vld [vmem:[%s4] sm:$0xf]
        %s533 = scalar_lea.vmem %s1, 16
        %v534 = vld [vmem:[%s533] sm:$0xf]
        %v535 = vld [vmem:[%s533 + $0x4] sm:$0xf]
        %v536 = vld [vmem:[%s533 + $0x8] sm:$0xf]
        %v537 = vld [vmem:[%s533 + $0xc] sm:$0xf]
        %v542 = vunpack.c.l.b16 %v534
        %v543 = vunpack.c.l.b16 %v535
        %v544 = vunpack.c.l.b16 %v536
        %v545 = vunpack.c.l.b16 %v537
        %v546 = vpack.c.b16 %v543, %v542
        %v547 = vpack.c.b16 %v545, %v544
        %550 = vmatprep.subr.bf16.mxu0 0
        %551 = vmatpush1.bf16.msra.mxu0 %v546
        %552 = vmatprep.subr.bf16.mxu0 0
        %553 = vmatpush1.bf16.msra.mxu0 %v547
        %554 = vmatprep.subr.bf16.mxu0 0
        %555 = vmatpush1.bf16.msra.mxu0 0
        %556 = vmatprep.subr.bf16.mxu0 0
        %557 = vmatpush1.bf16.msra.mxu0 0
        %558 = vmatprep.subr.bf16.mxu0 0
        %559 = vmatpush1.bf16.msra.mxu0 0
        %560 = vmatprep.subr.bf16.mxu0 0
        %561 = vmatpush1.bf16.msra.mxu0 0
        %562 = vmatprep.subr.bf16.mxu0 0
        %563 = vmatpush1.bf16.msra.mxu0 0
        %564 = vmatprep.subr.bf16.mxu0 0
        %565 = vmatpush1.bf16.msra.mxu0 0
        %566 = vmatprep.subr.bf16.mxu0 0
        %567 = vmatpush1.bf16.msra.mxu0 0
        %568 = vmatprep.subr.bf16.mxu0 0
        %569 = vmatpush1.bf16.msra.mxu0 0
        %570 = vmatprep.subr.bf16.mxu0 0
        %571 = vmatpush1.bf16.msra.mxu0 0
        %572 = vmatprep.subr.bf16.mxu0 0
        %573 = vmatpush1.bf16.msra.mxu0 0
        %574 = vmatprep.subr.bf16.mxu0 0
        %575 = vmatpush1.bf16.msra.mxu0 0
        %576 = vmatprep.subr.bf16.mxu0 0
        %577 = vmatpush1.bf16.msra.mxu0 0
        %578 = vmatprep.subr.bf16.mxu0 0
        %579 = vmatpush1.bf16.msra.mxu0 0
        %580 = vmatprep.subr.bf16.mxu0 0
        %581 = vmatpush1.bf16.msra.mxu0 0
        %582 = vmatprep.mubr.bf16.mxu0 0
        %583 = vmatmul.mubr.bf16.gmra.mrb[0].mxu0 %v268
        %v584 = vpop.f32.mrb[0].mxu0
        %v585 = vadd.f32 0.0, %v584
        %v586 = vpop.f32.mrb[0].mxu0
        %v587 = vpop.f32.mrb[0].mxu0
        %v588 = vpop.f32.mrb[0].mxu0
        %589 = vdwg.mxu0
        %v590 = vpack.c.bf16 %v585, %v585
        %s591 = scalar_lea.vmem %s2, 16
        %v592 = vld [vmem:[%s591] sm:$0xf]
        %v593 = vld [vmem:[%s591 + $0x4] sm:$0xf]
        %v594 = vld [vmem:[%s591 + $0x8] sm:$0xf]
        %v595 = vld [vmem:[%s591 + $0xc] sm:$0xf]
        %v600 = vunpack.c.l.b16 %v592
        %v601 = vunpack.c.l.b16 %v593
        %v602 = vunpack.c.l.b16 %v594
        %v603 = vunpack.c.l.b16 %v595
        %v604 = vpack.c.b16 %v601, %v600
        %v605 = vpack.c.b16 %v603, %v602
        %608 = vmatprep.subr.bf16.mxu0 0
        %609 = vmatpush1.bf16.msra.mxu0 %v604
        %610 = vmatprep.subr.bf16.mxu0 0
        %611 = vmatpush1.bf16.msra.mxu0 %v605
        %612 = vmatprep.subr.bf16.mxu0 0
        %613 = vmatpush1.bf16.msra.mxu0 0
        %614 = vmatprep.subr.bf16.mxu0 0
        %615 = vmatpush1.bf16.msra.mxu0 0
        %616 = vmatprep.subr.bf16.mxu0 0
        %617 = vmatpush1.bf16.msra.mxu0 0
        %618 = vmatprep.subr.bf16.mxu0 0
        %619 = vmatpush1.bf16.msra.mxu0 0
        %620 = vmatprep.subr.bf16.mxu0 0
        %621 = vmatpush1.bf16.msra.mxu0 0
        %622 = vmatprep.subr.bf16.mxu0 0
        %623 = vmatpush1.bf16.msra.mxu0 0
        %624 = vmatprep.subr.bf16.mxu0 0
        %625 = vmatpush1.bf16.msra.mxu0 0
        %626 = vmatprep.subr.bf16.mxu0 0
        %627 = vmatpush1.bf16.msra.mxu0 0
        %628 = vmatprep.subr.bf16.mxu0 0
        %629 = vmatpush1.bf16.msra.mxu0 0
        %630 = vmatprep.subr.bf16.mxu0 0
        %631 = vmatpush1.bf16.msra.mxu0 0
        %632 = vmatprep.subr.bf16.mxu0 0
        %633 = vmatpush1.bf16.msra.mxu0 0
        %634 = vmatprep.subr.bf16.mxu0 0
        %635 = vmatpush1.bf16.msra.mxu0 0
        %636 = vmatprep.subr.bf16.mxu0 0
        %637 = vmatpush1.bf16.msra.mxu0 0
        %638 = vmatprep.subr.bf16.mxu0 0
        %639 = vmatpush1.bf16.msra.mxu0 0
        %640 = vmatprep.mubr.bf16.mxu0 0
        %641 = vmatmul.mubr.bf16.gmra.mrb[0].mxu0 %v268
        %v642 = vpop.f32.mrb[0].mxu0
        %v643 = vadd.f32 0.0, %v642
        %v644 = vpop.f32.mrb[0].mxu0
        %v645 = vpop.f32.mrb[0].mxu0
        %v646 = vpop.f32.mrb[0].mxu0
        %647 = vdwg.mxu0
        %v648 = vpack.c.bf16 %v643, %v643
        %s649 = scalar_lea.vmem %s3, 16
        %v650 = vld [vmem:[%s649] sm:$0xf]
        %v651 = vld [vmem:[%s649 + $0x4] sm:$0xf]
        %v652 = vld [vmem:[%s649 + $0x8] sm:$0xf]
        %v653 = vld [vmem:[%s649 + $0xc] sm:$0xf]
        %v658 = vunpack.c.l.b16 %v650
        %v659 = vunpack.c.l.b16 %v651
        %v660 = vunpack.c.l.b16 %v652
        %v661 = vunpack.c.l.b16 %v653
        %v662 = vpack.c.b16 %v659, %v658
        %v663 = vpack.c.b16 %v661, %v660
        %666 = vmatprep.subr.bf16.mxu0 0
        %667 = vmatpush1.bf16.msra.mxu0 %v662
        %668 = vmatprep.subr.bf16.mxu0 0
        %669 = vmatpush1.bf16.msra.mxu0 %v663
        %670 = vmatprep.subr.bf16.mxu0 0
        %671 = vmatpush1.bf16.msra.mxu0 0
        %672 = vmatprep.subr.bf16.mxu0 0
        %673 = vmatpush1.bf16.msra.mxu0 0
        %674 = vmatprep.subr.bf16.mxu0 0
        %675 = vmatpush1.bf16.msra.mxu0 0
        %676 = vmatprep.subr.bf16.mxu0 0
        %677 = vmatpush1.bf16.msra.mxu0 0
        %678 = vmatprep.subr.bf16.mxu0 0
        %679 = vmatpush1.bf16.msra.mxu0 0
        %680 = vmatprep.subr.bf16.mxu0 0
        %681 = vmatpush1.bf16.msra.mxu0 0
        %682 = vmatprep.subr.bf16.mxu0 0
        %683 = vmatpush1.bf16.msra.mxu0 0
        %684 = vmatprep.subr.bf16.mxu0 0
        %685 = vmatpush1.bf16.msra.mxu0 0
        %686 = vmatprep.subr.bf16.mxu0 0
        %687 = vmatpush1.bf16.msra.mxu0 0
        %688 = vmatprep.subr.bf16.mxu0 0
        %689 = vmatpush1.bf16.msra.mxu0 0
        %690 = vmatprep.subr.bf16.mxu0 0
        %691 = vmatpush1.bf16.msra.mxu0 0
        %692 = vmatprep.subr.bf16.mxu0 0
        %693 = vmatpush1.bf16.msra.mxu0 0
        %694 = vmatprep.subr.bf16.mxu0 0
        %695 = vmatpush1.bf16.msra.mxu0 0
        %696 = vmatprep.subr.bf16.mxu0 0
        %697 = vmatpush1.bf16.msra.mxu0 0
        %698 = vmatprep.mubr.bf16.mxu0 0
        %699 = vmatmul.mubr.bf16.gmra.mrb[0].mxu0 %v268
        %v700 = vpop.f32.mrb[0].mxu0
        %v701 = vadd.f32 0.0, %v700
        %v702 = vpop.f32.mrb[0].mxu0
        %v703 = vpop.f32.mrb[0].mxu0
        %v704 = vpop.f32.mrb[0].mxu0
        %705 = vdwg.mxu0
        %v706 = vpack.c.bf16 %v701, %v701
        %v708 = vsel %vm425, %v590, 0
        %v711 = vsel %vm425, %v648, 0
        %713 = vmatprep.subr.bf16.mxu0 0
        %714 = vmatpush1.bf16.xpose.msra.mxu0 %v711
        %715 = vmatprep.subr.bf16.mxu0 0
        %716 = vmatpush1.bf16.xpose.msra.mxu0 0
        %717 = vmatprep.subr.bf16.mxu0 0
        %718 = vmatpush1.bf16.xpose.msra.mxu0 0
        %719 = vmatprep.subr.bf16.mxu0 0
        %720 = vmatpush1.bf16.xpose.msra.mxu0 0
        %721 = vmatprep.subr.bf16.mxu0 0
        %722 = vmatpush1.bf16.xpose.msra.mxu0 0
        %723 = vmatprep.subr.bf16.mxu0 0
        %724 = vmatpush1.bf16.xpose.msra.mxu0 0
        %725 = vmatprep.subr.bf16.mxu0 0
        %726 = vmatpush1.bf16.xpose.msra.mxu0 0
        %727 = vmatprep.subr.bf16.mxu0 0
        %728 = vmatpush1.bf16.xpose.msra.mxu0 0
        %729 = vmatprep.subr.bf16.mxu0 0
        %730 = vmatpush1.bf16.xpose.msra.mxu0 0
        %731 = vmatprep.subr.bf16.mxu0 0
        %732 = vmatpush1.bf16.xpose.msra.mxu0 0
        %733 = vmatprep.subr.bf16.mxu0 0
        %734 = vmatpush1.bf16.xpose.msra.mxu0 0
        %735 = vmatprep.subr.bf16.mxu0 0
        %736 = vmatpush1.bf16.xpose.msra.mxu0 0
        %737 = vmatprep.subr.bf16.mxu0 0
        %738 = vmatpush1.bf16.xpose.msra.mxu0 0
        %739 = vmatprep.subr.bf16.mxu0 0
        %740 = vmatpush1.bf16.xpose.msra.mxu0 0
        %741 = vmatprep.subr.bf16.mxu0 0
        %742 = vmatpush1.bf16.xpose.msra.mxu0 0
        %743 = vmatprep.subr.bf16.mxu0 0
        %744 = vmatpush1.bf16.xpose.msra.mxu0 0
        %745 = vmatprep.mubr.bf16.mxu0 0
        %746 = vmatmul.mubr.bf16.gmra.mrb[0].mxu0 %v708
        %v747 = vpop.f32.mrb[0].mxu0
        %v748 = vadd.f32 0.0, %v747
        %v749 = vpop.f32.mrb[0].mxu0
        %v750 = vpop.f32.mrb[0].mxu0
        %v751 = vpop.f32.mrb[0].mxu0
        %752 = vdwg.mxu0
        %v753 = vsel %vm425, %v748, -inf
        %754 = vmax.xlane.f32.xlu0 %v753
        %v755 = vpop.xlane.xlu0 %754
        %v756 = vsub.f32 %v748, %v755
        %v757 = vmul.f32 %v756, 1.442695
        %v758 = vpow.pop %v757
        %v759 = vsel %vm425, %v758, 0.0
        %760 = vadd.xlane.f32.xlu0 %v759
        %v761 = vpop.xlane.xlu0 %760
        %v762 = vrcp.pop %v761
        %v763 = vmul.f32 %v758, %v762
        %v764 = vpack.c.bf16 %v763, %v763
        %v766 = vsel %vm425, %v764, 0
        %v769 = vsel %vm487, %v706, 0
        %771 = vmatprep.subr.bf16.mxu0 0
        %772 = vmatpush1.bf16.msra.mxu0 %v769
        %773 = vmatprep.subr.bf16.mxu0 0
        %774 = vmatpush1.bf16.msra.mxu0 0
        %775 = vmatprep.subr.bf16.mxu0 0
        %776 = vmatpush1.bf16.msra.mxu0 0
        %777 = vmatprep.subr.bf16.mxu0 0
        %778 = vmatpush1.bf16.msra.mxu0 0
        %779 = vmatprep.subr.bf16.mxu0 0
        %780 = vmatpush1.bf16.msra.mxu0 0
        %781 = vmatprep.subr.bf16.mxu0 0
        %782 = vmatpush1.bf16.msra.mxu0 0
        %783 = vmatprep.subr.bf16.mxu0 0
        %784 = vmatpush1.bf16.msra.mxu0 0
        %785 = vmatprep.subr.bf16.mxu0 0
        %786 = vmatpush1.bf16.msra.mxu0 0
        %787 = vmatprep.subr.bf16.mxu0 0
        %788 = vmatpush1.bf16.msra.mxu0 0
        %789 = vmatprep.subr.bf16.mxu0 0
        %790 = vmatpush1.bf16.msra.mxu0 0
        %791 = vmatprep.subr.bf16.mxu0 0
        %792 = vmatpush1.bf16.msra.mxu0 0
        %793 = vmatprep.subr.bf16.mxu0 0
        %794 = vmatpush1.bf16.msra.mxu0 0
        %795 = vmatprep.subr.bf16.mxu0 0
        %796 = vmatpush1.bf16.msra.mxu0 0
        %797 = vmatprep.subr.bf16.mxu0 0
        %798 = vmatpush1.bf16.msra.mxu0 0
        %799 = vmatprep.subr.bf16.mxu0 0
        %800 = vmatpush1.bf16.msra.mxu0 0
        %801 = vmatprep.subr.bf16.mxu0 0
        %802 = vmatpush1.bf16.msra.mxu0 0
        %803 = vmatprep.mubr.bf16.mxu0 0
        %804 = vmatmul.mubr.bf16.gmra.mrb[0].mxu0 %v766
        %v805 = vpop.f32.mrb[0].mxu0
        %v806 = vadd.f32 0.0, %v805
        %v807 = vpop.f32.mrb[0].mxu0
        %v808 = vpop.f32.mrb[0].mxu0
        %v809 = vpop.f32.mrb[0].mxu0
        %810 = vdwg.mxu0
        %v811 = vpack.c.bf16 %v806, %v806
        %s812 = scalar_lea.vmem %s4, 4
        %v813 = vld [vmem:[%s812] sm:$0xf]
        %v815 = vsel %vm425, %v811, 0
        %v818 = vsel %vm487, %v813, 0
        %820 = vmatprep.subr.bf16.mxu0 0
        %821 = vmatpush1.bf16.msra.mxu0 %v818
        %822 = vmatprep.subr.bf16.mxu0 0
        %823 = vmatpush1.bf16.msra.mxu0 0
        %824 = vmatprep.subr.bf16.mxu0 0
        %825 = vmatpush1.bf16.msra.mxu0 0
        %826 = vmatprep.subr.bf16.mxu0 0
        %827 = vmatpush1.bf16.msra.mxu0 0
        %828 = vmatprep.subr.bf16.mxu0 0
        %829 = vmatpush1.bf16.msra.mxu0 0
        %830 = vmatprep.subr.bf16.mxu0 0
        %831 = vmatpush1.bf16.msra.mxu0 0
        %832 = vmatprep.subr.bf16.mxu0 0
        %833 = vmatpush1.bf16.msra.mxu0 0
        %834 = vmatprep.subr.bf16.mxu0 0
        %835 = vmatpush1.bf16.msra.mxu0 0
        %836 = vmatprep.subr.bf16.mxu0 0
        %837 = vmatpush1.bf16.msra.mxu0 0
        %838 = vmatprep.subr.bf16.mxu0 0
        %839 = vmatpush1.bf16.msra.mxu0 0
        %840 = vmatprep.subr.bf16.mxu0 0
        %841 = vmatpush1.bf16.msra.mxu0 0
        %842 = vmatprep.subr.bf16.mxu0 0
        %843 = vmatpush1.bf16.msra.mxu0 0
        %844 = vmatprep.subr.bf16.mxu0 0
        %845 = vmatpush1.bf16.msra.mxu0 0
        %846 = vmatprep.subr.bf16.mxu0 0
        %847 = vmatpush1.bf16.msra.mxu0 0
        %848 = vmatprep.subr.bf16.mxu0 0
        %849 = vmatpush1.bf16.msra.mxu0 0
        %850 = vmatprep.subr.bf16.mxu0 0
        %851 = vmatpush1.bf16.msra.mxu0 0
        %852 = vmatprep.mubr.bf16.mxu0 0
        %853 = vmatmul.mubr.bf16.gmra.mrb[0].mxu0 %v815
        %v854 = vpop.f32.mrb[0].mxu0
        %v855 = vadd.f32 0.0, %v854
        %v856 = vpop.f32.mrb[0].mxu0
        %v857 = vpop.f32.mrb[0].mxu0
        %v858 = vpop.f32.mrb[0].mxu0
        %859 = vdwg.mxu0
        %v861 = vsel %vm425, %v531, 0
        %v864 = vsel %vm487, %v532, 0
        %866 = vmatprep.subr.bf16.mxu0 0
        %867 = vmatpush1.bf16.msra.mxu0 %v864
        %868 = vmatprep.subr.bf16.mxu0 0
        %869 = vmatpush1.bf16.msra.mxu0 0
        %870 = vmatprep.subr.bf16.mxu0 0
        %871 = vmatpush1.bf16.msra.mxu0 0
        %872 = vmatprep.subr.bf16.mxu0 0
        %873 = vmatpush1.bf16.msra.mxu0 0
        %874 = vmatprep.subr.bf16.mxu0 0
        %875 = vmatpush1.bf16.msra.mxu0 0
        %876 = vmatprep.subr.bf16.mxu0 0
        %877 = vmatpush1.bf16.msra.mxu0 0
        %878 = vmatprep.subr.bf16.mxu0 0
        %879 = vmatpush1.bf16.msra.mxu0 0
        %880 = vmatprep.subr.bf16.mxu0 0
        %881 = vmatpush1.bf16.msra.mxu0 0
        %882 = vmatprep.subr.bf16.mxu0 0
        %883 = vmatpush1.bf16.msra.mxu0 0
        %884 = vmatprep.subr.bf16.mxu0 0
        %885 = vmatpush1.bf16.msra.mxu0 0
        %886 = vmatprep.subr.bf16.mxu0 0
        %887 = vmatpush1.bf16.msra.mxu0 0
        %888 = vmatprep.subr.bf16.mxu0 0
        %889 = vmatpush1.bf16.msra.mxu0 0
        %890 = vmatprep.subr.bf16.mxu0 0
        %891 = vmatpush1.bf16.msra.mxu0 0
        %892 = vmatprep.subr.bf16.mxu0 0
        %893 = vmatpush1.bf16.msra.mxu0 0
        %894 = vmatprep.subr.bf16.mxu0 0
        %895 = vmatpush1.bf16.msra.mxu0 0
        %896 = vmatprep.subr.bf16.mxu0 0
        %897 = vmatpush1.bf16.msra.mxu0 0
        %898 = vmatprep.mubr.bf16.mxu0 0
        %899 = vmatmul.mubr.bf16.gmra.mrb[0].mxu0 %v861
        %v900 = vpop.f32.mrb[0].mxu0
        %v901 = vadd.f32 %v855, %v900
        %v902 = vpop.f32.mrb[0].mxu0
        %v903 = vpop.f32.mrb[0].mxu0
        %v904 = vpop.f32.mrb[0].mxu0
        %905 = vdwg.mxu0
        %s906 = scalar_lea.vmem %s1, 32
        %v907 = vld [vmem:[%s906] sm:$0xf]
        %v908 = vld [vmem:[%s906 + $0x4] sm:$0xf]
        %v909 = vld [vmem:[%s906 + $0x8] sm:$0xf]
        %v910 = vld [vmem:[%s906 + $0xc] sm:$0xf]
        %v915 = vunpack.c.l.b16 %v907
        %v916 = vunpack.c.l.b16 %v908
        %v917 = vunpack.c.l.b16 %v909
        %v918 = vunpack.c.l.b16 %v910
        %v919 = vpack.c.b16 %v916, %v915
        %v920 = vpack.c.b16 %v918, %v917
        %923 = vmatprep.subr.bf16.mxu0 0
        %924 = vmatpush1.bf16.msra.mxu0 %v919
        %925 = vmatprep.subr.bf16.mxu0 0
        %926 = vmatpush1.bf16.msra.mxu0 %v920
        %927 = vmatprep.subr.bf16.mxu0 0
        %928 = vmatpush1.bf16.msra.mxu0 0
        %929 = vmatprep.subr.bf16.mxu0 0
        %930 = vmatpush1.bf16.msra.mxu0 0
        %931 = vmatprep.subr.bf16.mxu0 0
        %932 = vmatpush1.bf16.msra.mxu0 0
        %933 = vmatprep.subr.bf16.mxu0 0
        %934 = vmatpush1.bf16.msra.mxu0 0
        %935 = vmatprep.subr.bf16.mxu0 0
        %936 = vmatpush1.bf16.msra.mxu0 0
        %937 = vmatprep.subr.bf16.mxu0 0
        %938 = vmatpush1.bf16.msra.mxu0 0
        %939 = vmatprep.subr.bf16.mxu0 0
        %940 = vmatpush1.bf16.msra.mxu0 0
        %941 = vmatprep.subr.bf16.mxu0 0
        %942 = vmatpush1.bf16.msra.mxu0 0
        %943 = vmatprep.subr.bf16.mxu0 0
        %944 = vmatpush1.bf16.msra.mxu0 0
        %945 = vmatprep.subr.bf16.mxu0 0
        %946 = vmatpush1.bf16.msra.mxu0 0
        %947 = vmatprep.subr.bf16.mxu0 0
        %948 = vmatpush1.bf16.msra.mxu0 0
        %949 = vmatprep.subr.bf16.mxu0 0
        %950 = vmatpush1.bf16.msra.mxu0 0
        %951 = vmatprep.subr.bf16.mxu0 0
        %952 = vmatpush1.bf16.msra.mxu0 0
        %953 = vmatprep.subr.bf16.mxu0 0
        %954 = vmatpush1.bf16.msra.mxu0 0
        %955 = vmatprep.mubr.bf16.mxu0 0
        %956 = vmatmul.mubr.bf16.gmra.mrb[0].mxu0 %v268
        %v957 = vpop.f32.mrb[0].mxu0
        %v958 = vadd.f32 0.0, %v957
        %v959 = vpop.f32.mrb[0].mxu0
        %v960 = vpop.f32.mrb[0].mxu0
        %v961 = vpop.f32.mrb[0].mxu0
        %962 = vdwg.mxu0
        %v963 = vpack.c.bf16 %v958, %v958
        %s964 = scalar_lea.vmem %s2, 32
        %v965 = vld [vmem:[%s964] sm:$0xf]
        %v966 = vld [vmem:[%s964 + $0x4] sm:$0xf]
        %v967 = vld [vmem:[%s964 + $0x8] sm:$0xf]
        %v968 = vld [vmem:[%s964 + $0xc] sm:$0xf]
        %v973 = vunpack.c.l.b16 %v965
        %v974 = vunpack.c.l.b16 %v966
        %v975 = vunpack.c.l.b16 %v967
        %v976 = vunpack.c.l.b16 %v968
        %v977 = vpack.c.b16 %v974, %v973
        %v978 = vpack.c.b16 %v976, %v975
        %981 = vmatprep.subr.bf16.mxu0 0
        %982 = vmatpush1.bf16.msra.mxu0 %v977
        %983 = vmatprep.subr.bf16.mxu0 0
        %984 = vmatpush1.bf16.msra.mxu0 %v978
        %985 = vmatprep.subr.bf16.mxu0 0
        %986 = vmatpush1.bf16.msra.mxu0 0
        %987 = vmatprep.subr.bf16.mxu0 0
        %988 = vmatpush1.bf16.msra.mxu0 0
        %989 = vmatprep.subr.bf16.mxu0 0
        %990 = vmatpush1.bf16.msra.mxu0 0
        %991 = vmatprep.subr.bf16.mxu0 0
        %992 = vmatpush1.bf16.msra.mxu0 0
        %993 = vmatprep.subr.bf16.mxu0 0
        %994 = vmatpush1.bf16.msra.mxu0 0
        %995 = vmatprep.subr.bf16.mxu0 0
        %996 = vmatpush1.bf16.msra.mxu0 0
        %997 = vmatprep.subr.bf16.mxu0 0
        %998 = vmatpush1.bf16.msra.mxu0 0
        %999 = vmatprep.subr.bf16.mxu0 0
        %1000 = vmatpush1.bf16.msra.mxu0 0
        %1001 = vmatprep.subr.bf16.mxu0 0
        %1002 = vmatpush1.bf16.msra.mxu0 0
        %1003 = vmatprep.subr.bf16.mxu0 0
        %1004 = vmatpush1.bf16.msra.mxu0 0
        %1005 = vmatprep.subr.bf16.mxu0 0
        %1006 = vmatpush1.bf16.msra.mxu0 0
        %1007 = vmatprep.subr.bf16.mxu0 0
        %1008 = vmatpush1.bf16.msra.mxu0 0
        %1009 = vmatprep.subr.bf16.mxu0 0
        %1010 = vmatpush1.bf16.msra.mxu0 0
        %1011 = vmatprep.subr.bf16.mxu0 0
        %1012 = vmatpush1.bf16.msra.mxu0 0
        %1013 = vmatprep.mubr.bf16.mxu0 0
        %1014 = vmatmul.mubr.bf16.gmra.mrb[0].mxu0 %v268
        %v1015 = vpop.f32.mrb[0].mxu0
        %v1016 = vadd.f32 0.0, %v1015
        %v1017 = vpop.f32.mrb[0].mxu0
        %v1018 = vpop.f32.mrb[0].mxu0
        %v1019 = vpop.f32.mrb[0].mxu0
        %1020 = vdwg.mxu0
        %v1021 = vpack.c.bf16 %v1016, %v1016
        %s1022 = scalar_lea.vmem %s3, 32
        %v1023 = vld [vmem:[%s1022] sm:$0xf]
        %v1024 = vld [vmem:[%s1022 + $0x4] sm:$0xf]
        %v1025 = vld [vmem:[%s1022 + $0x8] sm:$0xf]
        %v1026 = vld [vmem:[%s1022 + $0xc] sm:$0xf]
        %v1031 = vunpack.c.l.b16 %v1023
        %v1032 = vunpack.c.l.b16 %v1024
        %v1033 = vunpack.c.l.b16 %v1025
        %v1034 = vunpack.c.l.b16 %v1026
        %v1035 = vpack.c.b16 %v1032, %v1031
        %v1036 = vpack.c.b16 %v1034, %v1033
        %1039 = vmatprep.subr.bf16.mxu0 0
        %1040 = vmatpush1.bf16.msra.mxu0 %v1035
        %1041 = vmatprep.subr.bf16.mxu0 0
        %1042 = vmatpush1.bf16.msra.mxu0 %v1036
        %1043 = vmatprep.subr.bf16.mxu0 0
        %1044 = vmatpush1.bf16.msra.mxu0 0
        %1045 = vmatprep.subr.bf16.mxu0 0
        %1046 = vmatpush1.bf16.msra.mxu0 0
        %1047 = vmatprep.subr.bf16.mxu0 0
        %1048 = vmatpush1.bf16.msra.mxu0 0
        %1049 = vmatprep.subr.bf16.mxu0 0
        %1050 = vmatpush1.bf16.msra.mxu0 0
        %1051 = vmatprep.subr.bf16.mxu0 0
        %1052 = vmatpush1.bf16.msra.mxu0 0
        %1053 = vmatprep.subr.bf16.mxu0 0
        %1054 = vmatpush1.bf16.msra.mxu0 0
        %1055 = vmatprep.subr.bf16.mxu0 0
        %1056 = vmatpush1.bf16.msra.mxu0 0
        %1057 = vmatprep.subr.bf16.mxu0 0
        %1058 = vmatpush1.bf16.msra.mxu0 0
        %1059 = vmatprep.subr.bf16.mxu0 0
        %1060 = vmatpush1.bf16.msra.mxu0 0
        %1061 = vmatprep.subr.bf16.mxu0 0
        %1062 = vmatpush1.bf16.msra.mxu0 0
        %1063 = vmatprep.subr.bf16.mxu0 0
        %1064 = vmatpush1.bf16.msra.mxu0 0
        %1065 = vmatprep.subr.bf16.mxu0 0
        %1066 = vmatpush1.bf16.msra.mxu0 0
        %1067 = vmatprep.subr.bf16.mxu0 0
        %1068 = vmatpush1.bf16.msra.mxu0 0
        %1069 = vmatprep.subr.bf16.mxu0 0
        %1070 = vmatpush1.bf16.msra.mxu0 0
        %1071 = vmatprep.mubr.bf16.mxu0 0
        %1072 = vmatmul.mubr.bf16.gmra.mrb[0].mxu0 %v268
        %v1073 = vpop.f32.mrb[0].mxu0
        %v1074 = vadd.f32 0.0, %v1073
        %v1075 = vpop.f32.mrb[0].mxu0
        %v1076 = vpop.f32.mrb[0].mxu0
        %v1077 = vpop.f32.mrb[0].mxu0
        %1078 = vdwg.mxu0
        %v1079 = vpack.c.bf16 %v1074, %v1074
        %v1081 = vsel %vm425, %v963, 0
        %v1084 = vsel %vm425, %v1021, 0
        %1086 = vmatprep.subr.bf16.mxu0 0
        %1087 = vmatpush1.bf16.xpose.msra.mxu0 %v1084
        %1088 = vmatprep.subr.bf16.mxu0 0
        %1089 = vmatpush1.bf16.xpose.msra.mxu0 0
        %1090 = vmatprep.subr.bf16.mxu0 0
        %1091 = vmatpush1.bf16.xpose.msra.mxu0 0
        %1092 = vmatprep.subr.bf16.mxu0 0
        %1093 = vmatpush1.bf16.xpose.msra.mxu0 0
        %1094 = vmatprep.subr.bf16.mxu0 0
        %1095 = vmatpush1.bf16.xpose.msra.mxu0 0
        %1096 = vmatprep.subr.bf16.mxu0 0
        %1097 = vmatpush1.bf16.xpose.msra.mxu0 0
        %1098 = vmatprep.subr.bf16.mxu0 0
        %1099 = vmatpush1.bf16.xpose.msra.mxu0 0
        %1100 = vmatprep.subr.bf16.mxu0 0
        %1101 = vmatpush1.bf16.xpose.msra.mxu0 0
        %1102 = vmatprep.subr.bf16.mxu0 0
        %1103 = vmatpush1.bf16.xpose.msra.mxu0 0
        %1104 = vmatprep.subr.bf16.mxu0 0
        %1105 = vmatpush1.bf16.xpose.msra.mxu0 0
        %1106 = vmatprep.subr.bf16.mxu0 0
        %1107 = vmatpush1.bf16.xpose.msra.mxu0 0
        %1108 = vmatprep.subr.bf16.mxu0 0
        %1109 = vmatpush1.bf16.xpose.msra.mxu0 0
        %1110 = vmatprep.subr.bf16.mxu0 0
        %1111 = vmatpush1.bf16.xpose.msra.mxu0 0
        %1112 = vmatprep.subr.bf16.mxu0 0
        %1113 = vmatpush1.bf16.xpose.msra.mxu0 0
        %1114 = vmatprep.subr.bf16.mxu0 0
        %1115 = vmatpush1.bf16.xpose.msra.mxu0 0
        %1116 = vmatprep.subr.bf16.mxu0 0
        %1117 = vmatpush1.bf16.xpose.msra.mxu0 0
        %1118 = vmatprep.mubr.bf16.mxu0 0
        %1119 = vmatmul.mubr.bf16.gmra.mrb[0].mxu0 %v1081
        %v1120 = vpop.f32.mrb[0].mxu0
        %v1121 = vadd.f32 0.0, %v1120
        %v1122 = vpop.f32.mrb[0].mxu0
        %v1123 = vpop.f32.mrb[0].mxu0
        %v1124 = vpop.f32.mrb[0].mxu0
        %1125 = vdwg.mxu0
        %v1126 = vsel %vm425, %v1121, -inf
        %1127 = vmax.xlane.f32.xlu0 %v1126
        %v1128 = vpop.xlane.xlu0 %1127
        %v1129 = vsub.f32 %v1121, %v1128
        %v1130 = vmul.f32 %v1129, 1.442695
        %v1131 = vpow.pop %v1130
        %v1132 = vsel %vm425, %v1131, 0.0
        %1133 = vadd.xlane.f32.xlu0 %v1132
        %v1134 = vpop.xlane.xlu0 %1133
        %v1135 = vrcp.pop %v1134
        %v1136 = vmul.f32 %v1131, %v1135
        %v1137 = vpack.c.bf16 %v1136, %v1136
        %v1139 = vsel %vm425, %v1137, 0
        %v1142 = vsel %vm487, %v1079, 0
        %1144 = vmatprep.subr.bf16.mxu0 0
        %1145 = vmatpush1.bf16.msra.mxu0 %v1142
        %1146 = vmatprep.subr.bf16.mxu0 0
        %1147 = vmatpush1.bf16.msra.mxu0 0
        %1148 = vmatprep.subr.bf16.mxu0 0
        %1149 = vmatpush1.bf16.msra.mxu0 0
        %1150 = vmatprep.subr.bf16.mxu0 0
        %1151 = vmatpush1.bf16.msra.mxu0 0
        %1152 = vmatprep.subr.bf16.mxu0 0
        %1153 = vmatpush1.bf16.msra.mxu0 0
        %1154 = vmatprep.subr.bf16.mxu0 0
        %1155 = vmatpush1.bf16.msra.mxu0 0
        %1156 = vmatprep.subr.bf16.mxu0 0
        %1157 = vmatpush1.bf16.msra.mxu0 0
        %1158 = vmatprep.subr.bf16.mxu0 0
        %1159 = vmatpush1.bf16.msra.mxu0 0
        %1160 = vmatprep.subr.bf16.mxu0 0
        %1161 = vmatpush1.bf16.msra.mxu0 0
        %1162 = vmatprep.subr.bf16.mxu0 0
        %1163 = vmatpush1.bf16.msra.mxu0 0
        %1164 = vmatprep.subr.bf16.mxu0 0
        %1165 = vmatpush1.bf16.msra.mxu0 0
        %1166 = vmatprep.subr.bf16.mxu0 0
        %1167 = vmatpush1.bf16.msra.mxu0 0
        %1168 = vmatprep.subr.bf16.mxu0 0
        %1169 = vmatpush1.bf16.msra.mxu0 0
        %1170 = vmatprep.subr.bf16.mxu0 0
        %1171 = vmatpush1.bf16.msra.mxu0 0
        %1172 = vmatprep.subr.bf16.mxu0 0
        %1173 = vmatpush1.bf16.msra.mxu0 0
        %1174 = vmatprep.subr.bf16.mxu0 0
        %1175 = vmatpush1.bf16.msra.mxu0 0
        %1176 = vmatprep.mubr.bf16.mxu0 0
        %1177 = vmatmul.mubr.bf16.gmra.mrb[0].mxu0 %v1139
        %v1178 = vpop.f32.mrb[0].mxu0
        %v1179 = vadd.f32 0.0, %v1178
        %v1180 = vpop.f32.mrb[0].mxu0
        %v1181 = vpop.f32.mrb[0].mxu0
        %v1182 = vpop.f32.mrb[0].mxu0
        %1183 = vdwg.mxu0
        %v1184 = vpack.c.bf16 %v1179, %v1179
        %s1185 = scalar_lea.vmem %s4, 8
        %v1186 = vld [vmem:[%s1185] sm:$0xf]
        %v1188 = vsel %vm425, %v1184, 0
        %v1191 = vsel %vm487, %v1186, 0
        %1193 = vmatprep.subr.bf16.mxu0 0
        %1194 = vmatpush1.bf16.msra.mxu0 %v1191
        %1195 = vmatprep.subr.bf16.mxu0 0
        %1196 = vmatpush1.bf16.msra.mxu0 0
        %1197 = vmatprep.subr.bf16.mxu0 0
        %1198 = vmatpush1.bf16.msra.mxu0 0
        %1199 = vmatprep.subr.bf16.mxu0 0
        %1200 = vmatpush1.bf16.msra.mxu0 0
        %1201 = vmatprep.subr.bf16.mxu0 0
        %1202 = vmatpush1.bf16.msra.mxu0 0
        %1203 = vmatprep.subr.bf16.mxu0 0
        %1204 = vmatpush1.bf16.msra.mxu0 0
        %1205 = vmatprep.subr.bf16.mxu0 0
        %1206 = vmatpush1.bf16.msra.mxu0 0
        %1207 = vmatprep.subr.bf16.mxu0 0
        %1208 = vmatpush1.bf16.msra.mxu0 0
        %1209 = vmatprep.subr.bf16.mxu0 0
        %1210 = vmatpush1.bf16.msra.mxu0 0
        %1211 = vmatprep.subr.bf16.mxu0 0
        %1212 = vmatpush1.bf16.msra.mxu0 0
        %1213 = vmatprep.subr.bf16.mxu0 0
        %1214 = vmatpush1.bf16.msra.mxu0 0
        %1215 = vmatprep.subr.bf16.mxu0 0
        %1216 = vmatpush1.bf16.msra.mxu0 0
        %1217 = vmatprep.subr.bf16.mxu0 0
        %1218 = vmatpush1.bf16.msra.mxu0 0
        %1219 = vmatprep.subr.bf16.mxu0 0
        %1220 = vmatpush1.bf16.msra.mxu0 0
        %1221 = vmatprep.subr.bf16.mxu0 0
        %1222 = vmatpush1.bf16.msra.mxu0 0
        %1223 = vmatprep.subr.bf16.mxu0 0
        %1224 = vmatpush1.bf16.msra.mxu0 0
        %1225 = vmatprep.mubr.bf16.mxu0 0
        %1226 = vmatmul.mubr.bf16.gmra.mrb[0].mxu0 %v1188
        %v1227 = vpop.f32.mrb[0].mxu0
        %v1228 = vadd.f32 0.0, %v1227
        %v1229 = vpop.f32.mrb[0].mxu0
        %v1230 = vpop.f32.mrb[0].mxu0
        %v1231 = vpop.f32.mrb[0].mxu0
        %1232 = vdwg.mxu0
        %v1233 = vadd.f32 %v901, %v1228
        %s1234 = scalar_lea.vmem %s1, 48
        %v1235 = vld [vmem:[%s1234] sm:$0xf]
        %v1236 = vld [vmem:[%s1234 + $0x4] sm:$0xf]
        %v1237 = vld [vmem:[%s1234 + $0x8] sm:$0xf]
        %v1238 = vld [vmem:[%s1234 + $0xc] sm:$0xf]
        %v1243 = vunpack.c.l.b16 %v1235
        %v1244 = vunpack.c.l.b16 %v1236
        %v1245 = vunpack.c.l.b16 %v1237
        %v1246 = vunpack.c.l.b16 %v1238
        %v1247 = vpack.c.b16 %v1244, %v1243
        %v1248 = vpack.c.b16 %v1246, %v1245
        %1251 = vmatprep.subr.bf16.mxu0 0
        %1252 = vmatpush1.bf16.msra.mxu0 %v1247
        %1253 = vmatprep.subr.bf16.mxu0 0
        %1254 = vmatpush1.bf16.msra.mxu0 %v1248
        %1255 = vmatprep.subr.bf16.mxu0 0
        %1256 = vmatpush1.bf16.msra.mxu0 0
        %1257 = vmatprep.subr.bf16.mxu0 0
        %1258 = vmatpush1.bf16.msra.mxu0 0
        %1259 = vmatprep.subr.bf16.mxu0 0
        %1260 = vmatpush1.bf16.msra.mxu0 0
        %1261 = vmatprep.subr.bf16.mxu0 0
        %1262 = vmatpush1.bf16.msra.mxu0 0
        %1263 = vmatprep.subr.bf16.mxu0 0
        %1264 = vmatpush1.bf16.msra.mxu0 0
        %1265 = vmatprep.subr.bf16.mxu0 0
        %1266 = vmatpush1.bf16.msra.mxu0 0
        %1267 = vmatprep.subr.bf16.mxu0 0
        %1268 = vmatpush1.bf16.msra.mxu0 0
        %1269 = vmatprep.subr.bf16.mxu0 0
        %1270 = vmatpush1.bf16.msra.mxu0 0
        %1271 = vmatprep.subr.bf16.mxu0 0
        %1272 = vmatpush1.bf16.msra.mxu0 0
        %1273 = vmatprep.subr.bf16.mxu0 0
        %1274 = vmatpush1.bf16.msra.mxu0 0
        %1275 = vmatprep.subr.bf16.mxu0 0
        %1276 = vmatpush1.bf16.msra.mxu0 0
        %1277 = vmatprep.subr.bf16.mxu0 0
        %1278 = vmatpush1.bf16.msra.mxu0 0
        %1279 = vmatprep.subr.bf16.mxu0 0
        %1280 = vmatpush1.bf16.msra.mxu0 0
        %1281 = vmatprep.subr.bf16.mxu0 0
        %1282 = vmatpush1.bf16.msra.mxu0 0
        %1283 = vmatprep.mubr.bf16.mxu0 0
        %1284 = vmatmul.mubr.bf16.gmra.mrb[0].mxu0 %v268
        %v1285 = vpop.f32.mrb[0].mxu0
        %v1286 = vadd.f32 0.0, %v1285
        %v1287 = vpop.f32.mrb[0].mxu0
        %v1288 = vpop.f32.mrb[0].mxu0
        %v1289 = vpop.f32.mrb[0].mxu0
        %1290 = vdwg.mxu0
        %v1291 = vpack.c.bf16 %v1286, %v1286
        %s1292 = scalar_lea.vmem %s2, 48
        %v1293 = vld [vmem:[%s1292] sm:$0xf]
        %v1294 = vld [vmem:[%s1292 + $0x4] sm:$0xf]
        %v1295 = vld [vmem:[%s1292 + $0x8] sm:$0xf]
        %v1296 = vld [vmem:[%s1292 + $0xc] sm:$0xf]
        %v1301 = vunpack.c.l.b16 %v1293
        %v1302 = vunpack.c.l.b16 %v1294
        %v1303 = vunpack.c.l.b16 %v1295
        %v1304 = vunpack.c.l.b16 %v1296
        %v1305 = vpack.c.b16 %v1302, %v1301
        %v1306 = vpack.c.b16 %v1304, %v1303
        %1309 = vmatprep.subr.bf16.mxu0 0
        %1310 = vmatpush1.bf16.msra.mxu0 %v1305
        %1311 = vmatprep.subr.bf16.mxu0 0
        %1312 = vmatpush1.bf16.msra.mxu0 %v1306
        %1313 = vmatprep.subr.bf16.mxu0 0
        %1314 = vmatpush1.bf16.msra.mxu0 0
        %1315 = vmatprep.subr.bf16.mxu0 0
        %1316 = vmatpush1.bf16.msra.mxu0 0
        %1317 = vmatprep.subr.bf16.mxu0 0
        %1318 = vmatpush1.bf16.msra.mxu0 0
        %1319 = vmatprep.subr.bf16.mxu0 0
        %1320 = vmatpush1.bf16.msra.mxu0 0
        %1321 = vmatprep.subr.bf16.mxu0 0
        %1322 = vmatpush1.bf16.msra.mxu0 0
        %1323 = vmatprep.subr.bf16.mxu0 0
        %1324 = vmatpush1.bf16.msra.mxu0 0
        %1325 = vmatprep.subr.bf16.mxu0 0
        %1326 = vmatpush1.bf16.msra.mxu0 0
        %1327 = vmatprep.subr.bf16.mxu0 0
        %1328 = vmatpush1.bf16.msra.mxu0 0
        %1329 = vmatprep.subr.bf16.mxu0 0
        %1330 = vmatpush1.bf16.msra.mxu0 0
        %1331 = vmatprep.subr.bf16.mxu0 0
        %1332 = vmatpush1.bf16.msra.mxu0 0
        %1333 = vmatprep.subr.bf16.mxu0 0
        %1334 = vmatpush1.bf16.msra.mxu0 0
        %1335 = vmatprep.subr.bf16.mxu0 0
        %1336 = vmatpush1.bf16.msra.mxu0 0
        %1337 = vmatprep.subr.bf16.mxu0 0
        %1338 = vmatpush1.bf16.msra.mxu0 0
        %1339 = vmatprep.subr.bf16.mxu0 0
        %1340 = vmatpush1.bf16.msra.mxu0 0
        %1341 = vmatprep.mubr.bf16.mxu0 0
        %1342 = vmatmul.mubr.bf16.gmra.mrb[0].mxu0 %v268
        %v1343 = vpop.f32.mrb[0].mxu0
        %v1344 = vadd.f32 0.0, %v1343
        %v1345 = vpop.f32.mrb[0].mxu0
        %v1346 = vpop.f32.mrb[0].mxu0
        %v1347 = vpop.f32.mrb[0].mxu0
        %1348 = vdwg.mxu0
        %v1349 = vpack.c.bf16 %v1344, %v1344
        %s1350 = scalar_lea.vmem %s3, 48
        %v1351 = vld [vmem:[%s1350] sm:$0xf]
        %v1352 = vld [vmem:[%s1350 + $0x4] sm:$0xf]
        %v1353 = vld [vmem:[%s1350 + $0x8] sm:$0xf]
        %v1354 = vld [vmem:[%s1350 + $0xc] sm:$0xf]
        %v1359 = vunpack.c.l.b16 %v1351
        %v1360 = vunpack.c.l.b16 %v1352
        %v1361 = vunpack.c.l.b16 %v1353
        %v1362 = vunpack.c.l.b16 %v1354
        %v1363 = vpack.c.b16 %v1360, %v1359
        %v1364 = vpack.c.b16 %v1362, %v1361
        %1367 = vmatprep.subr.bf16.mxu0 0
        %1368 = vmatpush1.bf16.msra.mxu0 %v1363
        %1369 = vmatprep.subr.bf16.mxu0 0
        %1370 = vmatpush1.bf16.msra.mxu0 %v1364
        %1371 = vmatprep.subr.bf16.mxu0 0
        %1372 = vmatpush1.bf16.msra.mxu0 0
        %1373 = vmatprep.subr.bf16.mxu0 0
        %1374 = vmatpush1.bf16.msra.mxu0 0
        %1375 = vmatprep.subr.bf16.mxu0 0
        %1376 = vmatpush1.bf16.msra.mxu0 0
        %1377 = vmatprep.subr.bf16.mxu0 0
        %1378 = vmatpush1.bf16.msra.mxu0 0
        %1379 = vmatprep.subr.bf16.mxu0 0
        %1380 = vmatpush1.bf16.msra.mxu0 0
        %1381 = vmatprep.subr.bf16.mxu0 0
        %1382 = vmatpush1.bf16.msra.mxu0 0
        %1383 = vmatprep.subr.bf16.mxu0 0
        %1384 = vmatpush1.bf16.msra.mxu0 0
        %1385 = vmatprep.subr.bf16.mxu0 0
        %1386 = vmatpush1.bf16.msra.mxu0 0
        %1387 = vmatprep.subr.bf16.mxu0 0
        %1388 = vmatpush1.bf16.msra.mxu0 0
        %1389 = vmatprep.subr.bf16.mxu0 0
        %1390 = vmatpush1.bf16.msra.mxu0 0
        %1391 = vmatprep.subr.bf16.mxu0 0
        %1392 = vmatpush1.bf16.msra.mxu0 0
        %1393 = vmatprep.subr.bf16.mxu0 0
        %1394 = vmatpush1.bf16.msra.mxu0 0
        %1395 = vmatprep.subr.bf16.mxu0 0
        %1396 = vmatpush1.bf16.msra.mxu0 0
        %1397 = vmatprep.subr.bf16.mxu0 0
        %1398 = vmatpush1.bf16.msra.mxu0 0
        %1399 = vmatprep.mubr.bf16.mxu0 0
        %1400 = vmatmul.mubr.bf16.gmra.mrb[0].mxu0 %v268
        %v1401 = vpop.f32.mrb[0].mxu0
        %v1402 = vadd.f32 0.0, %v1401
        %v1403 = vpop.f32.mrb[0].mxu0
        %v1404 = vpop.f32.mrb[0].mxu0
        %v1405 = vpop.f32.mrb[0].mxu0
        %1406 = vdwg.mxu0
        %v1407 = vpack.c.bf16 %v1402, %v1402
        %v1409 = vsel %vm425, %v1291, 0
        %v1412 = vsel %vm425, %v1349, 0
        %1414 = vmatprep.subr.bf16.mxu0 0
        %1415 = vmatpush1.bf16.xpose.msra.mxu0 %v1412
        %1416 = vmatprep.subr.bf16.mxu0 0
        %1417 = vmatpush1.bf16.xpose.msra.mxu0 0
        %1418 = vmatprep.subr.bf16.mxu0 0
        %1419 = vmatpush1.bf16.xpose.msra.mxu0 0
        %1420 = vmatprep.subr.bf16.mxu0 0
        %1421 = vmatpush1.bf16.xpose.msra.mxu0 0
        %1422 = vmatprep.subr.bf16.mxu0 0
        %1423 = vmatpush1.bf16.xpose.msra.mxu0 0
        %1424 = vmatprep.subr.bf16.mxu0 0
        %1425 = vmatpush1.bf16.xpose.msra.mxu0 0
        %1426 = vmatprep.subr.bf16.mxu0 0
        %1427 = vmatpush1.bf16.xpose.msra.mxu0 0
        %1428 = vmatprep.subr.bf16.mxu0 0
        %1429 = vmatpush1.bf16.xpose.msra.mxu0 0
        %1430 = vmatprep.subr.bf16.mxu0 0
        %1431 = vmatpush1.bf16.xpose.msra.mxu0 0
        %1432 = vmatprep.subr.bf16.mxu0 0
        %1433 = vmatpush1.bf16.xpose.msra.mxu0 0
        %1434 = vmatprep.subr.bf16.mxu0 0
        %1435 = vmatpush1.bf16.xpose.msra.mxu0 0
        %1436 = vmatprep.subr.bf16.mxu0 0
        %1437 = vmatpush1.bf16.xpose.msra.mxu0 0
        %1438 = vmatprep.subr.bf16.mxu0 0
        %1439 = vmatpush1.bf16.xpose.msra.mxu0 0
        %1440 = vmatprep.subr.bf16.mxu0 0
        %1441 = vmatpush1.bf16.xpose.msra.mxu0 0
        %1442 = vmatprep.subr.bf16.mxu0 0
        %1443 = vmatpush1.bf16.xpose.msra.mxu0 0
        %1444 = vmatprep.subr.bf16.mxu0 0
        %1445 = vmatpush1.bf16.xpose.msra.mxu0 0
        %1446 = vmatprep.mubr.bf16.mxu0 0
        %1447 = vmatmul.mubr.bf16.gmra.mrb[0].mxu0 %v1409
        %v1448 = vpop.f32.mrb[0].mxu0
        %v1449 = vadd.f32 0.0, %v1448
        %v1450 = vpop.f32.mrb[0].mxu0
        %v1451 = vpop.f32.mrb[0].mxu0
        %v1452 = vpop.f32.mrb[0].mxu0
        %1453 = vdwg.mxu0
        %v1454 = vsel %vm425, %v1449, -inf
        %1455 = vmax.xlane.f32.xlu0 %v1454
        %v1456 = vpop.xlane.xlu0 %1455
        %v1457 = vsub.f32 %v1449, %v1456
        %v1458 = vmul.f32 %v1457, 1.442695
        %v1459 = vpow.pop %v1458
        %v1460 = vsel %vm425, %v1459, 0.0
        %1461 = vadd.xlane.f32.xlu0 %v1460
        %v1462 = vpop.xlane.xlu0 %1461
        %v1463 = vrcp.pop %v1462
        %v1464 = vmul.f32 %v1459, %v1463
        %v1465 = vpack.c.bf16 %v1464, %v1464
        %v1467 = vsel %vm425, %v1465, 0
        %v1470 = vsel %vm487, %v1407, 0
        %1472 = vmatprep.subr.bf16.mxu0 0
        %1473 = vmatpush1.bf16.msra.mxu0 %v1470
        %1474 = vmatprep.subr.bf16.mxu0 0
        %1475 = vmatpush1.bf16.msra.mxu0 0
        %1476 = vmatprep.subr.bf16.mxu0 0
        %1477 = vmatpush1.bf16.msra.mxu0 0
        %1478 = vmatprep.subr.bf16.mxu0 0
        %1479 = vmatpush1.bf16.msra.mxu0 0
        %1480 = vmatprep.subr.bf16.mxu0 0
        %1481 = vmatpush1.bf16.msra.mxu0 0
        %1482 = vmatprep.subr.bf16.mxu0 0
        %1483 = vmatpush1.bf16.msra.mxu0 0
        %1484 = vmatprep.subr.bf16.mxu0 0
        %1485 = vmatpush1.bf16.msra.mxu0 0
        %1486 = vmatprep.subr.bf16.mxu0 0
        %1487 = vmatpush1.bf16.msra.mxu0 0
        %1488 = vmatprep.subr.bf16.mxu0 0
        %1489 = vmatpush1.bf16.msra.mxu0 0
        %1490 = vmatprep.subr.bf16.mxu0 0
        %1491 = vmatpush1.bf16.msra.mxu0 0
        %1492 = vmatprep.subr.bf16.mxu0 0
        %1493 = vmatpush1.bf16.msra.mxu0 0
        %1494 = vmatprep.subr.bf16.mxu0 0
        %1495 = vmatpush1.bf16.msra.mxu0 0
        %1496 = vmatprep.subr.bf16.mxu0 0
        %1497 = vmatpush1.bf16.msra.mxu0 0
        %1498 = vmatprep.subr.bf16.mxu0 0
        %1499 = vmatpush1.bf16.msra.mxu0 0
        %1500 = vmatprep.subr.bf16.mxu0 0
        %1501 = vmatpush1.bf16.msra.mxu0 0
        %1502 = vmatprep.subr.bf16.mxu0 0
        %1503 = vmatpush1.bf16.msra.mxu0 0
        %1504 = vmatprep.mubr.bf16.mxu0 0
        %1505 = vmatmul.mubr.bf16.gmra.mrb[0].mxu0 %v1467
        %v1506 = vpop.f32.mrb[0].mxu0
        %v1507 = vadd.f32 0.0, %v1506
        %v1508 = vpop.f32.mrb[0].mxu0
        %v1509 = vpop.f32.mrb[0].mxu0
        %v1510 = vpop.f32.mrb[0].mxu0
        %1511 = vdwg.mxu0
        %v1512 = vpack.c.bf16 %v1507, %v1507
        %s1513 = scalar_lea.vmem %s4, 12
        %v1514 = vld [vmem:[%s1513] sm:$0xf]
        %v1516 = vsel %vm425, %v1512, 0
        %v1519 = vsel %vm487, %v1514, 0
        %1521 = vmatprep.subr.bf16.mxu0 0
        %1522 = vmatpush1.bf16.msra.mxu0 %v1519
        %1523 = vmatprep.subr.bf16.mxu0 0
        %1524 = vmatpush1.bf16.msra.mxu0 0
        %1525 = vmatprep.subr.bf16.mxu0 0
        %1526 = vmatpush1.bf16.msra.mxu0 0
        %1527 = vmatprep.subr.bf16.mxu0 0
        %1528 = vmatpush1.bf16.msra.mxu0 0
        %1529 = vmatprep.subr.bf16.mxu0 0
        %1530 = vmatpush1.bf16.msra.mxu0 0
        %1531 = vmatprep.subr.bf16.mxu0 0
        %1532 = vmatpush1.bf16.msra.mxu0 0
        %1533 = vmatprep.subr.bf16.mxu0 0
        %1534 = vmatpush1.bf16.msra.mxu0 0
        %1535 = vmatprep.subr.bf16.mxu0 0
        %1536 = vmatpush1.bf16.msra.mxu0 0
        %1537 = vmatprep.subr.bf16.mxu0 0
        %1538 = vmatpush1.bf16.msra.mxu0 0
        %1539 = vmatprep.subr.bf16.mxu0 0
        %1540 = vmatpush1.bf16.msra.mxu0 0
        %1541 = vmatprep.subr.bf16.mxu0 0
        %1542 = vmatpush1.bf16.msra.mxu0 0
        %1543 = vmatprep.subr.bf16.mxu0 0
        %1544 = vmatpush1.bf16.msra.mxu0 0
        %1545 = vmatprep.subr.bf16.mxu0 0
        %1546 = vmatpush1.bf16.msra.mxu0 0
        %1547 = vmatprep.subr.bf16.mxu0 0
        %1548 = vmatpush1.bf16.msra.mxu0 0
        %1549 = vmatprep.subr.bf16.mxu0 0
        %1550 = vmatpush1.bf16.msra.mxu0 0
        %1551 = vmatprep.subr.bf16.mxu0 0
        %1552 = vmatpush1.bf16.msra.mxu0 0
        %1553 = vmatprep.mubr.bf16.mxu0 0
        %1554 = vmatmul.mubr.bf16.gmra.mrb[0].mxu0 %v1516
        %v1555 = vpop.f32.mrb[0].mxu0
        %v1556 = vadd.f32 0.0, %v1555
        %v1557 = vpop.f32.mrb[0].mxu0
        %v1558 = vpop.f32.mrb[0].mxu0
        %v1559 = vpop.f32.mrb[0].mxu0
        %1560 = vdwg.mxu0
        %v1561 = vadd.f32 %v1233, %v1556
        %v1563 = vlaneseq
        %v1564 = vshrl.u32 %v1563, 7
        %v1565 = vsub.s32 0, %v1564
        %v1566 = vrot.slane %v249, %v1565
        %v1568 = vadd.f32 %v1561, %v1566
        %1569 = vst.msk [vmem:[%s242] sm:$0xff] %vm266, %v1568
        %s1570 = sand.u32 %s159, 1
        %s1571 = scalar_lea.sflag [#allocation3], %s1570
        %s1572 = sand.u32 %s159, 1
        %s1573 = smul.addr %s1572, 8
        %s1574 = scalar_lea.vmem [#allocation2], %s1573
        // Predicated region
        $region45: #{tpu_custom_call.1} parent=43 // pred_check
          %p1575 = pneg %p169
        $region46: #{tpu_custom_call.1} parent=43 // pred_check_branch
          %1577 = sbr.rel (%p1575) target = $region48
        $region47: #{tpu_custom_call.1} parent=43 // pred_region
          %s1579 = ssub.s32 128, 128
          %1580 = vsyncadd %s1571, %s1579
          %s1581 = smul.addr %s20, 128
          %s1582 = scalar_lea.hbm %s6, %s1581
          %s1584 = sshll.u32 %s1574, 4
          %s1585 = int_to_ptr.vmem [resolvable:$true] %s1584
          %1587 = dma.vmem_to_hbm [thread:$0]  %s1585, 128, %s1582, %s1571
        $region48: #{tpu_custom_call.1} parent=43 // pred_fallthru
          _
      $region44: #{tpu_custom_call.1} parent=5 // pred_fallthru
        _
      %p1588 = scmp.le.s32.totalorder 2, %s15
      // Predicated region
      $region49: #{tpu_custom_call.1} parent=5 // pred_check
        %p1589 = pneg %p1588
      $region50: #{tpu_custom_call.1} parent=5 // pred_check_branch
        %1591 = sbr.rel (%p1589) target = $region52
      $region51: #{tpu_custom_call.1} parent=5 // pred_region
        %s1592 = ssub.s32 %s15, 2
        // Predicated region
        $region53: #{tpu_custom_call.1} parent=51 // pred_check
          %p1593 = pneg %p175
        $region54: #{tpu_custom_call.1} parent=51 // pred_check_branch
          %1595 = sbr.rel (%p1593) target = $region56
        $region55: #{tpu_custom_call.1} parent=51 // pred_region
          %s1596 = sand.u32 %s160, 1
          %s1597 = scalar_lea.sflag [#allocation3], %s1596
          %s1598 = sand.u32 %s160, 1
          %s1599 = smul.addr %s1598, 8
          %s1600 = scalar_lea.vmem [#allocation2], %s1599
          %1601 = dma.done %s1597, 128
        $region56: #{tpu_custom_call.1} parent=51 // pred_fallthru
          _
      $region52: #{tpu_custom_call.1} parent=5 // pred_fallthru
        _
    $region6: #{tpu_custom_call.1} parent=1 // loop_footer
      %s19 = sadd.s32 1, %s15
    $region7: #{tpu_custom_call.1} parent=1 // loop_footer_branch
      %14 = sbr.rel target = $region3
    $region8: #{tpu_custom_call.1} parent=1 // loop_exit
      _
    %1602 = vsyncpa [#allocation3], 1
    %s1603 = scalar_lea.sflag [#allocation3], 1
    %1604 = vsyncpa %s1603, 1

</llo_original>
